<compile_context>
chip_gen: v6e
topology: v6e:2x2x1
jax: 0.10.0
libtpu: 0.0.40
codegen_flags: <defaults>
</compile_context>

<pallas_src>
import functools

import jax
import jax.numpy as jnp
from jax.experimental import pallas as pl
from jax.experimental.pallas import tpu as pltpu


EMBED = 20     # embedding_size in the PyTorch module
LANE = 128     # lane-dense padded width for features / classes


def _round_up(x, m):
    return ((x + m - 1) // m) * m


def _vmem_limit_bytes():
    """~3/4 of physical VMEM: ~96 MiB on v5e/v6e, ~48 MiB on v7x."""
    cap = 64 * 1024 * 1024
    try:
        info = pltpu.get_tpu_info()
        cap = int(getattr(info, "vmem_capacity_bytes", cap))
    except Exception:
        pass
    return int(cap * 3 // 4)


def _choose_row_tile(vmem_limit):
    # Bigger tiles -> fewer grid steps and fewer touches of the resident
    # operands.  512 is safe with 128 MiB VMEM (v5e/v6e); 256 on v7x (64 MiB).
    return 512 if vmem_limit >= (80 << 20) else 256


def _fits_fused(n, fin, vmem_limit):
    np_ = _round_up(max(n, 8), LANE)
    a_bytes = np_ * np_ * 2                       # bf16 A resident
    h_bytes = np_ * (fin + 6 * LANE) * 4          # x + f32 intermediates (worst case)
    return (a_bytes + h_bytes) <= int(vmem_limit * 0.6)


def _const_spec(shape, single_buffer):
    """BlockSpec for an operand whose block index is constant across the grid."""
    zeros = (0,) * len(shape)
    if single_buffer:
        # Constant index -> the second pipeline buffer is pure VMEM waste.
        return pl.BlockSpec(shape, lambda i: zeros, pipeline_mode=pl.Buffered(1))
    return pl.BlockSpec(shape, lambda i: zeros)


# ---------------------------------------------------------------------------
# Fused single-pass kernel (A resident in VMEM): 3 layers + pool + Linear.
# ---------------------------------------------------------------------------
def _gcn_fused_kernel(a_ref, x_ref, w1_ref, b1_ref, w2_ref, b2_ref, w3_ref,
                      b3_ref, wlmax_ref, wlmean_ref, bl_ref, out_ref, *, n_true):
    a = a_ref[...]                                       # [Np, Np] bf16

    def layer(h, w_ref, b_ref):
        ah = jnp.dot(a, h, preferred_element_type=jnp.float32)
        z = jnp.dot(ah.astype(jnp.bfloat16), w_ref[...],
                    preferred_element_type=jnp.float32) + b_ref[...]
        sumsq = jnp.sum(z * z, axis=1, keepdims=True)
        inv = jax.lax.rsqrt(jnp.maximum(sumsq, 1e-24))   # == 1/max(||z||,1e-12)
        return jnp.maximum(z * inv, 0.0)

    h1 = layer(x_ref[...], w1_ref, b1_ref).astype(jnp.bfloat16)
    h2 = layer(h1, w2_ref, b2_ref).astype(jnp.bfloat16)
    h3 = layer(h2, w3_ref, b3_ref)                       # f32 for pooling

    # Mask padded rows (post-ReLU values are >= 0, so 0 is neutral for max;
    # the mean divides by the true node count).
    row = jax.lax.broadcasted_iota(jnp.int32, (h3.shape[0], 1), 0)
    h3 = jnp.where(row < n_true, h3, 0.0)

    pooled_max = jnp.max(h3, axis=0, keepdims=True)
    pooled_mean = jnp.sum(h3, axis=0, keepdims=True) * (1.0 / n_true)
    out_ref[...] = (
        jnp.dot(pooled_max, wlmax_ref[...], preferred_element_type=jnp.float32)
        + jnp.dot(pooled_mean, wlmean_ref[...], preferred_element_type=jnp.float32)
        + bl_ref[...])


def _gcn_fused(a_pad, x_pad, w1, b1, w2, b2, w3, b3, wl_max, wl_mean, bl,
               n_true, vmem_limit):
    cp = bl.shape[1]
    kernel = functools.partial(_gcn_fused_kernel, n_true=n_true)
    # No grid / no specs: every operand lands fully (single-buffered) in VMEM;
    # A is streamed from HBM exactly once for the whole forward pass.
    return pl.pallas_call(
        kernel,
        out_shape=jax.ShapeDtypeStruct((1, cp), jnp.float32),
        compiler_params=pltpu.CompilerParams(vmem_limit_bytes=vmem_limit),
    )(a_pad, x_pad, w1, b1, w2, b2, w3, b3, wl_max, wl_mean, bl)


# ---------------------------------------------------------------------------
# Row-tiled path (large graphs): per-layer kernels + fused pool/linear kernel.
# ---------------------------------------------------------------------------
def _gcn_layer_kernel(a_ref, h_ref, w_ref, b_ref, o_ref):
    # One row tile of: relu( l2_normalize( A_hat[tile, :] @ H @ W + b ) )
    a = a_ref[...]                                           # [TM, Nc] bf16
    ah = jnp.dot(a, h_ref[...], preferred_element_type=jnp.float32)
    z = jnp.dot(ah.astype(jnp.bfloat16), w_ref[...],
                preferred_element_type=jnp.float32) + b_ref[...]
    sumsq = jnp.sum(z * z, axis=1, keepdims=True)
    inv = jax.lax.rsqrt(jnp.maximum(sumsq, 1e-24))
    o_ref[...] = (jnp.maximum(z * inv, 0.0)).astype(o_ref.dtype)


def _gcn_final_kernel(a_ref, h_ref, w_ref, b_ref, wlmax_ref, wlmean_ref, bl_ref,
                      out_ref, max_acc, sum_acc, *, n_true, tm):
    # Third GCN layer fused with global max/mean pooling + final Linear.
    i = pl.program_id(0)

    @pl.when(i == 0)
    def _():
        max_acc[...] = jnp.zeros_like(max_acc)   # post-ReLU values are >= 0
        sum_acc[...] = jnp.zeros_like(sum_acc)

    a = a_ref[...]
    ah = jnp.dot(a, h_ref[...], preferred_element_type=jnp.float32)
    z = jnp.dot(ah.astype(jnp.bfloat16), w_ref[...],
                preferred_element_type=jnp.float32) + b_ref[...]
    sumsq = jnp.sum(z * z, axis=1, keepdims=True)
    inv = jax.lax.rsqrt(jnp.maximum(sumsq, 1e-24))
    h3 = jnp.maximum(z * inv, 0.0)                           # [TM, Fp]

    row = i * tm + jax.lax.broadcasted_iota(jnp.int32, (tm, 1), 0)
    h3 = jnp.where(row < n_true, h3, 0.0)

    max_acc[...] = jnp.maximum(max_acc[...], jnp.max(h3, axis=0, keepdims=True))
    sum_acc[...] = sum_acc[...] + jnp.sum(h3, axis=0, keepdims=True)

    @pl.when(i == pl.num_programs(0) - 1)
    def _():
        pooled_max = max_acc[...]
        pooled_mean = sum_acc[...] * (1.0 / n_true)
        out_ref[...] = (
            jnp.dot(pooled_max, wlmax_ref[...], preferred_element_type=jnp.float32)
            + jnp.dot(pooled_mean, wlmean_ref[...], preferred_element_type=jnp.float32)
            + bl_ref[...])


def _gcn_layer(a_pad, h_pad, w, b, tm, vmem_limit, single_buffer):
    np_rows, np_cols = a_pad.shape
    fin = h_pad.shape[1]
    fout = w.shape[1]
    return pl.pallas_call(
        _gcn_layer_kernel,
        out_shape=jax.ShapeDtypeStruct((np_rows, fout), jnp.bfloat16),
        grid=(np_rows // tm,),
        in_specs=[
            pl.BlockSpec((tm, np_cols), lambda i: (i, 0)),    # streamed A tile (bf16)
            _const_spec((np_cols, fin), single_buffer),       # resident H (bf16)
            _const_spec((fin, fout), single_buffer),          # weight (bf16)
            _const_spec((1, fout), single_buffer),            # bias (f32)
        ],
        out_specs=pl.BlockSpec((tm, fout), lambda i: (i, 0)),
        compiler_params=pltpu.CompilerParams(
            dimension_semantics=("parallel",),                # independent row tiles
            vmem_limit_bytes=vmem_limit),
    )(a_pad, h_pad, w, b)


def _gcn_final(a_pad, h_pad, w, b, wl_max, wl_mean, bl, tm, n_true, vmem_limit,
               single_buffer):
    np_rows, np_cols = a_pad.shape
    fin = h_pad.shape[1]
    fout = w.shape[1]
    cp = wl_max.shape[1]
    kernel = functools.partial(_gcn_final_kernel, n_true=n_true, tm=tm)
    return pl.pallas_call(
        kernel,
        out_shape=jax.ShapeDtypeStruct((1, cp), jnp.float32),
        grid=(np_rows // tm,),
        in_specs=[
            pl.BlockSpec((tm, np_cols), lambda i: (i, 0)),
            _const_spec((np_cols, fin), single_buffer),
            _const_spec((fin, fout), single_buffer),
            _const_spec((1, fout), single_buffer),
            _const_spec((fout, cp), single_buffer),           # w_lin (max half)
            _const_spec((fout, cp), single_buffer),           # w_lin (mean half)
            _const_spec((1, cp), single_buffer),              # b_lin
        ],
        out_specs=pl.BlockSpec((1, cp), lambda i: (0, 0)),
        scratch_shapes=[pltpu.VMEM((1, fout), jnp.float32),   # running max
                        pltpu.VMEM((1, fout), jnp.float32)],  # running sum
        compiler_params=pltpu.CompilerParams(
            dimension_semantics=("arbitrary",),               # pool reduces across tiles
            vmem_limit_bytes=vmem_limit),
    )(a_pad, h_pad, w, b, wl_max, wl_mean, bl)


# ---------------------------------------------------------------------------
# Wrapper
# ---------------------------------------------------------------------------
def _pad2(x, rows, cols):
    return jnp.pad(x, ((0, rows - x.shape[0]), (0, cols - x.shape[1])))


def graph_gcn_forward(a_hat, x, params, *, force_tiled=False,
                      single_buffer_consts=True):
    """Fused GraphGCN forward pass using Pallas TPU kernels."""
    n, f = x.shape
    c = params["b_lin"].shape[-1]

    fin = _round_up(f, LANE)
    fp = _round_up(EMBED, LANE)
    cp = _round_up(c, LANE)
    vmem_limit = _vmem_limit_bytes()

    # Weights: bf16 (matmul operands), biases / final linear: f32 (tiny).
    w1 = _pad2(params["w1"], fin, fp).astype(jnp.bfloat16)
    w2 = _pad2(params["w2"], fp, fp).astype(jnp.bfloat16)
    w3 = _pad2(params["w3"], fp, fp).astype(jnp.bfloat16)
    b1 = _pad2(params["b1"], 1, fp)
    b2 = _pad2(params["b2"], 1, fp)
    b3 = _pad2(params["b3"], 1, fp)
    # Pre-split the final Linear so the kernels never slice a VMEM value.
    wl_max = _pad2(params["w_lin"][:EMBED], fp, cp)
    wl_mean = _pad2(params["w_lin"][EMBED:], fp, cp)
    bl = _pad2(params["b_lin"], 1, cp)

    if (not force_tiled) and _fits_fused(n, fin, vmem_limit):
        # Single-pass fused kernel: A streamed from HBM exactly once.
        np_ = _round_up(max(n, 8), LANE)
        a_pad = _pad2(a_hat, np_, np_).astype(jnp.bfloat16)
        x_pad = _pad2(x, np_, fin).astype(jnp.bfloat16)
        out = _gcn_fused(a_pad, x_pad, w1, b1, w2, b2, w3, b3,
                         wl_max, wl_mean, bl, n, vmem_limit)
    else:
        # Row-tiled path: rows pad to a multiple of TM, columns (lane dim) only
        # to a multiple of 128 -- no wasted streamed bytes from "unlucky" n.
        tm = _choose_row_tile(vmem_limit)
        np_rows = _round_up(n, tm)
        np_cols = _round_up(n, LANE)
        a_pad = _pad2(a_hat, np_rows, np_cols).astype(jnp.bfloat16)
        x_pad = _pad2(x, np_cols, fin).astype(jnp.bfloat16)

        h1 = _gcn_layer(a_pad, x_pad, w1, b1, tm, vmem_limit,
                        single_buffer_consts)[:np_cols]
        h2 = _gcn_layer(a_pad, h1, w2, b2, tm, vmem_limit,
                        single_buffer_consts)[:np_cols]
        out = _gcn_final(a_pad, h2, w3, b3, wl_max, wl_mean, bl, tm, n,
                         vmem_limit, single_buffer_consts)
    return out[:, :c]


def build_normalized_adjacency(edge_index, edge_weights, num_nodes):
    """Dense D^-1/2 (A + I) D^-1/2 as used by PyG GCNConv."""
    # TODO(synk): scatter-based dense adjacency construction stays plain-JAX glue.
    src, dst = edge_index[0], edge_index[1]
    a = jnp.zeros((num_nodes, num_nodes), jnp.float32)
    a = a.at[src, dst].add(edge_weights)
    a = a + jnp.eye(num_nodes, dtype=jnp.float32)     # self loops, weight 1
    deg = jnp.sum(a, axis=1)
    d_inv_sqrt = jnp.where(deg > 0, 1.0 / jnp.sqrt(deg), 0.0)
    return d_inv_sqrt[:, None] * a * d_inv_sqrt[None, :]


def init_params(key, num_features, num_classes):
    """Deterministic synthetic parameters with the module's shapes."""
    ks = jax.random.split(key, 8)

    def glorot(k, fan_in, fan_out):
        lim = jnp.sqrt(6.0 / (fan_in + fan_out))
        return jax.random.uniform(k, (fan_in, fan_out), jnp.float32, -lim, lim)

    return {
        "w1": glorot(ks[0], num_features, EMBED),
        "b1": jnp.zeros((1, EMBED), jnp.float32),
        "w2": glorot(ks[1], EMBED, EMBED),
        "b2": jnp.zeros((1, EMBED), jnp.float32),
        "w3": glorot(ks[2], EMBED, EMBED),
        "b3": jnp.zeros((1, EMBED), jnp.float32),
        "w_lin": glorot(ks[3], 2 * EMBED, num_classes),
        "b_lin": jax.random.uniform(ks[4], (1, num_classes), jnp.float32,
                                    -0.1, 0.1),
    }


def _reference_forward(a_hat, x, params):
    """Pure-JAX f32 reference of the PyTorch forward (for the sanity check)."""
    h = x
    for wk, bk in (("w1", "b1"), ("w2", "b2"), ("w3", "b3")):
        h = a_hat @ (h @ params[wk]) + params[bk]
        norm = jnp.sqrt(jnp.sum(h * h, axis=1, keepdims=True))
        h = h / jnp.maximum(norm, 1e-12)
        h = jnp.maximum(h, 0.0)
    pooled = jnp.concatenate([jnp.max(h, axis=0, keepdims=True),
                              jnp.mean(h, axis=0, keepdims=True)], axis=-1)
    return pooled @ params["w_lin"] + params["b_lin"]


def _ring_graph(n):
    src = jnp.arange(n, dtype=jnp.int32)
    dst = (src + 1) % n
    edge_index = jnp.stack([jnp.concatenate([src, dst]),
                            jnp.concatenate([dst, src])], axis=0)
    edge_weights = jnp.ones((edge_index.shape[1],), jnp.float32)
    return edge_index, edge_weights


if __name__ == "__main__":
    key = jax.random.PRNGKey(0)
    k_x1, k_x2, k_p = jax.random.split(key, 3)

    num_features, num_classes = 10, 2
    params = init_params(k_p, num_features, num_classes)

    # --- Small graph: single-pass fused kernel (A resident in VMEM). ---
    n1 = 16
    x1 = jax.random.normal(k_x1, (n1, num_features), jnp.float32)
    ei1, ew1 = _ring_graph(n1)
    a1 = build_normalized_adjacency(ei1, ew1, n1)
    out1 = graph_gcn_forward(a1, x1, params)
    jax.block_until_ready(out1)
    assert out1.shape == (1, num_classes)
    ref1 = _reference_forward(a1, x1, params)
    err1 = float(jnp.max(jnp.abs(out1 - ref1)))
    assert err1 < 1e-1, f"fused kernel/reference mismatch: {err1}"

    # --- Larger graph forced down the row-tiled multi-kernel path. ---
    n2 = 300
    x2 = jax.random.normal(k_x2, (n2, num_features), jnp.float32)
    ei2, ew2 = _ring_graph(n2)
    a2 = build_normalized_adjacency(ei2, ew2, n2)
    try:
        out2 = graph_gcn_forward(a2, x2, params, force_tiled=True)
        jax.block_until_ready(out2)
    except Exception:
        # pipeline_mode=pl.Buffered(1) support varies across JAX versions;
        # fall back to default double-buffering of the constant operands.
        out2 = graph_gcn_forward(a2, x2, params, force_tiled=True,
                                 single_buffer_consts=False)
        jax.block_until_ready(out2)
    assert out2.shape == (1, num_classes)
    ref2 = _reference_forward(a2, x2, params)
    err2 = float(jnp.max(jnp.abs(out2 - ref2)))
    assert err2 < 1e-1, f"tiled kernel/reference mismatch: {err2}"

    print("KERNEL_OK")
</pallas_src>

<mosaic_0001>
module attributes {stable_mosaic.version = 11 : i64} {
  func.func @_gcn_fused_kernel(%arg0: memref<128x128xbf16, #tpu.memory_space<vmem>>, %arg1: memref<128x128xbf16, #tpu.memory_space<vmem>>, %arg2: memref<128x128xbf16, #tpu.memory_space<vmem>>, %arg3: memref<1x128xf32, #tpu.memory_space<vmem>>, %arg4: memref<128x128xbf16, #tpu.memory_space<vmem>>, %arg5: memref<1x128xf32, #tpu.memory_space<vmem>>, %arg6: memref<128x128xbf16, #tpu.memory_space<vmem>>, %arg7: memref<1x128xf32, #tpu.memory_space<vmem>>, %arg8: memref<128x128xf32, #tpu.memory_space<vmem>>, %arg9: memref<128x128xf32, #tpu.memory_space<vmem>>, %arg10: memref<1x128xf32, #tpu.memory_space<vmem>>, %arg11: memref<1x128xf32, #tpu.memory_space<vmem>>) attributes {dimension_semantics = [], scalar_prefetch = 0 : i64, scratch_operands = 0 : i64, tpu.core_type = #tpu.core_type<tc>} {
    %c0 = arith.constant 0 : index
    %c0_0 = arith.constant 0 : index
    %0 = vector.load %arg0[%c0, %c0_0] : memref<128x128xbf16, #tpu.memory_space<vmem>>, vector<128x128xbf16>
    %c0_1 = arith.constant 0 : index
    %c0_2 = arith.constant 0 : index
    %1 = vector.load %arg1[%c0_1, %c0_2] : memref<128x128xbf16, #tpu.memory_space<vmem>>, vector<128x128xbf16>
    %cst = arith.constant dense<0.000000e+00> : vector<128x128xf32>
    %2 = tpu.matmul %0, %1, %cst {dimension_numbers = #tpu.dot_dimension_numbers<[1], [0], [0], [1], [0, 0, 1, 1], [], []>} : vector<128x128xbf16>, vector<128x128xbf16>, vector<128x128xf32> -> vector<128x128xf32>
    %3 = arith.truncf %2 : vector<128x128xf32> to vector<128x128xbf16>
    %c0_3 = arith.constant 0 : index
    %c0_4 = arith.constant 0 : index
    %4 = vector.load %arg2[%c0_3, %c0_4] : memref<128x128xbf16, #tpu.memory_space<vmem>>, vector<128x128xbf16>
    %cst_5 = arith.constant dense<0.000000e+00> : vector<128x128xf32>
    %5 = tpu.matmul %3, %4, %cst_5 {dimension_numbers = #tpu.dot_dimension_numbers<[1], [0], [0], [1], [0, 0, 1, 1], [], []>} : vector<128x128xbf16>, vector<128x128xbf16>, vector<128x128xf32> -> vector<128x128xf32>
    %c0_6 = arith.constant 0 : index
    %c0_7 = arith.constant 0 : index
    %6 = vector.load %arg3[%c0_6, %c0_7] : memref<1x128xf32, #tpu.memory_space<vmem>>, vector<1x128xf32>
    %7 = vector.broadcast %6 : vector<1x128xf32> to vector<128x128xf32>
    %8 = arith.addf %5, %7 : vector<128x128xf32>
    %9 = arith.mulf %8, %8 : vector<128x128xf32>
    %cst_8 = arith.constant dense<0.000000e+00> : vector<128xf32>
    %10 = vector.multi_reduction <add>, %9, %cst_8 [1] : vector<128x128xf32> to vector<128xf32>
    %11 = vector.shape_cast %10 : vector<128xf32> to vector<128x1xf32>
    %cst_9 = arith.constant 1.000000e-24 : f32
    %12 = vector.broadcast %cst_9 : f32 to vector<128x1xf32>
    %13 = arith.maximumf %11, %12 : vector<128x1xf32>
    %14 = math.rsqrt %13 : vector<128x1xf32>
    %15 = vector.broadcast %14 : vector<128x1xf32> to vector<128x128xf32>
    %16 = arith.mulf %8, %15 : vector<128x128xf32>
    %cst_10 = arith.constant 0.000000e+00 : f32
    %17 = vector.broadcast %cst_10 : f32 to vector<128x128xf32>
    %18 = arith.maximumf %16, %17 : vector<128x128xf32>
    %19 = arith.truncf %18 : vector<128x128xf32> to vector<128x128xbf16>
    %cst_11 = arith.constant dense<0.000000e+00> : vector<128x128xf32>
    %20 = tpu.matmul %0, %19, %cst_11 {dimension_numbers = #tpu.dot_dimension_numbers<[1], [0], [0], [1], [0, 0, 1, 1], [], []>} : vector<128x128xbf16>, vector<128x128xbf16>, vector<128x128xf32> -> vector<128x128xf32>
    %21 = arith.truncf %20 : vector<128x128xf32> to vector<128x128xbf16>
    %c0_12 = arith.constant 0 : index
    %c0_13 = arith.constant 0 : index
    %22 = vector.load %arg4[%c0_12, %c0_13] : memref<128x128xbf16, #tpu.memory_space<vmem>>, vector<128x128xbf16>
    %cst_14 = arith.constant dense<0.000000e+00> : vector<128x128xf32>
    %23 = tpu.matmul %21, %22, %cst_14 {dimension_numbers = #tpu.dot_dimension_numbers<[1], [0], [0], [1], [0, 0, 1, 1], [], []>} : vector<128x128xbf16>, vector<128x128xbf16>, vector<128x128xf32> -> vector<128x128xf32>
    %c0_15 = arith.constant 0 : index
    %c0_16 = arith.constant 0 : index
    %24 = vector.load %arg5[%c0_15, %c0_16] : memref<1x128xf32, #tpu.memory_space<vmem>>, vector<1x128xf32>
    %25 = vector.broadcast %24 : vector<1x128xf32> to vector<128x128xf32>
    %26 = arith.addf %23, %25 : vector<128x128xf32>
    %27 = arith.mulf %26, %26 : vector<128x128xf32>
    %cst_17 = arith.constant dense<0.000000e+00> : vector<128xf32>
    %28 = vector.multi_reduction <add>, %27, %cst_17 [1] : vector<128x128xf32> to vector<128xf32>
    %29 = vector.shape_cast %28 : vector<128xf32> to vector<128x1xf32>
    %cst_18 = arith.constant 1.000000e-24 : f32
    %30 = vector.broadcast %cst_18 : f32 to vector<128x1xf32>
    %31 = arith.maximumf %29, %30 : vector<128x1xf32>
    %32 = math.rsqrt %31 : vector<128x1xf32>
    %33 = vector.broadcast %32 : vector<128x1xf32> to vector<128x128xf32>
    %34 = arith.mulf %26, %33 : vector<128x128xf32>
    %cst_19 = arith.constant 0.000000e+00 : f32
    %35 = vector.broadcast %cst_19 : f32 to vector<128x128xf32>
    %36 = arith.maximumf %34, %35 : vector<128x128xf32>
    %37 = arith.truncf %36 : vector<128x128xf32> to vector<128x128xbf16>
    %cst_20 = arith.constant dense<0.000000e+00> : vector<128x128xf32>
    %38 = tpu.matmul %0, %37, %cst_20 {dimension_numbers = #tpu.dot_dimension_numbers<[1], [0], [0], [1], [0, 0, 1, 1], [], []>} : vector<128x128xbf16>, vector<128x128xbf16>, vector<128x128xf32> -> vector<128x128xf32>
    %39 = arith.truncf %38 : vector<128x128xf32> to vector<128x128xbf16>
    %c0_21 = arith.constant 0 : index
    %c0_22 = arith.constant 0 : index
    %40 = vector.load %arg6[%c0_21, %c0_22] : memref<128x128xbf16, #tpu.memory_space<vmem>>, vector<128x128xbf16>
    %cst_23 = arith.constant dense<0.000000e+00> : vector<128x128xf32>
    %41 = tpu.matmul %39, %40, %cst_23 {dimension_numbers = #tpu.dot_dimension_numbers<[1], [0], [0], [1], [0, 0, 1, 1], [], []>} : vector<128x128xbf16>, vector<128x128xbf16>, vector<128x128xf32> -> vector<128x128xf32>
    %c0_24 = arith.constant 0 : index
    %c0_25 = arith.constant 0 : index
    %42 = vector.load %arg7[%c0_24, %c0_25] : memref<1x128xf32, #tpu.memory_space<vmem>>, vector<1x128xf32>
    %43 = vector.broadcast %42 : vector<1x128xf32> to vector<128x128xf32>
    %44 = arith.addf %41, %43 : vector<128x128xf32>
    %45 = arith.mulf %44, %44 : vector<128x128xf32>
    %cst_26 = arith.constant dense<0.000000e+00> : vector<128xf32>
    %46 = vector.multi_reduction <add>, %45, %cst_26 [1] : vector<128x128xf32> to vector<128xf32>
    %47 = vector.shape_cast %46 : vector<128xf32> to vector<128x1xf32>
    %cst_27 = arith.constant 1.000000e-24 : f32
    %48 = vector.broadcast %cst_27 : f32 to vector<128x1xf32>
    %49 = arith.maximumf %47, %48 : vector<128x1xf32>
    %50 = math.rsqrt %49 : vector<128x1xf32>
    %51 = vector.broadcast %50 : vector<128x1xf32> to vector<128x128xf32>
    %52 = arith.mulf %44, %51 : vector<128x128xf32>
    %cst_28 = arith.constant 0.000000e+00 : f32
    %53 = vector.broadcast %cst_28 : f32 to vector<128x128xf32>
    %54 = arith.maximumf %52, %53 : vector<128x128xf32>
    %55 = tpu.iota {dimensions = array<i32: 0>} : vector<128x1xi32>
    %c16_i32 = arith.constant 16 : i32
    %56 = vector.broadcast %c16_i32 : i32 to vector<128x1xi32>
    %57 = arith.cmpi slt, %55, %56 : vector<128x1xi32>
    %cst_29 = arith.constant 0.000000e+00 : f32
    %58 = vector.shape_cast %57 : vector<128x1xi1> to vector<128x1xi1>
    %59 = vector.broadcast %58 : vector<128x1xi1> to vector<128x128xi1>
    %60 = vector.broadcast %cst_29 : f32 to vector<128x128xf32>
    %61 = arith.select %59, %54, %60 : vector<128x128xi1>, vector<128x128xf32>
    %cst_30 = arith.constant dense<0xFF800000> : vector<128xf32>
    %62 = vector.multi_reduction <maximumf>, %61, %cst_30 [0] : vector<128x128xf32> to vector<128xf32>
    %63 = vector.shape_cast %62 : vector<128xf32> to vector<1x128xf32>
    %cst_31 = arith.constant dense<0.000000e+00> : vector<128xf32>
    %64 = vector.multi_reduction <add>, %61, %cst_31 [0] : vector<128x128xf32> to vector<128xf32>
    %65 = vector.shape_cast %64 : vector<128xf32> to vector<1x128xf32>
    %cst_32 = arith.constant 6.250000e-02 : f32
    %66 = vector.broadcast %cst_32 : f32 to vector<1x128xf32>
    %67 = arith.mulf %65, %66 : vector<1x128xf32>
    %c0_33 = arith.constant 0 : index
    %c0_34 = arith.constant 0 : index
    %68 = vector.load %arg8[%c0_33, %c0_34] : memref<128x128xf32, #tpu.memory_space<vmem>>, vector<128x128xf32>
    %cst_35 = arith.constant dense<0.000000e+00> : vector<1x128xf32>
    %69 = tpu.matmul %63, %68, %cst_35 {dimension_numbers = #tpu.dot_dimension_numbers<[1], [0], [0], [1], [0, 0, 1, 1], [], []>} : vector<1x128xf32>, vector<128x128xf32>, vector<1x128xf32> -> vector<1x128xf32>
    %c0_36 = arith.constant 0 : index
    %c0_37 = arith.constant 0 : index
    %70 = vector.load %arg9[%c0_36, %c0_37] : memref<128x128xf32, #tpu.memory_space<vmem>>, vector<128x128xf32>
    %cst_38 = arith.constant dense<0.000000e+00> : vector<1x128xf32>
    %71 = tpu.matmul %67, %70, %cst_38 {dimension_numbers = #tpu.dot_dimension_numbers<[1], [0], [0], [1], [0, 0, 1, 1], [], []>} : vector<1x128xf32>, vector<128x128xf32>, vector<1x128xf32> -> vector<1x128xf32>
    %72 = arith.addf %69, %71 : vector<1x128xf32>
    %c0_39 = arith.constant 0 : index
    %c0_40 = arith.constant 0 : index
    %73 = vector.load %arg10[%c0_39, %c0_40] : memref<1x128xf32, #tpu.memory_space<vmem>>, vector<1x128xf32>
    %74 = arith.addf %72, %73 : vector<1x128xf32>
    %c0_41 = arith.constant 0 : index
    %c0_42 = arith.constant 0 : index
    %75 = vector.load %arg11[%c0_41, %c0_42] : memref<1x128xf32, #tpu.memory_space<vmem>>, vector<1x128xf32>
    tpu.vector_store %arg11[%c0_41, %c0_42], %74 {strides = array<i32>} : memref<1x128xf32, #tpu.memory_space<vmem>>, vector<1x128xf32>,
    return
  }
}

</mosaic_0001>

<llo_original>
// kernel: tpu_custom_call.1
$region0: #{tpu_custom_call.1}
  #allocation0 [shape = 'u32[]', space=smem, size = 0x4, offset = 0x4, fixed_abs, tag = 'smem constant byte address 0x4 - core index']
  #allocation1 [shape = 'u32[144,128]{1,0:T(1,128)}', space=vmem, size = 0x12000, scoped, tag = 'internal scratch']
  %s0 = inlined_call_operand.hbm [shape: bf16[128,128], index: 0, kind: input, shape index: {}]
  %s1 = inlined_call_operand.hbm [shape: bf16[128,128], index: 1, kind: input, shape index: {}]
  %s2 = inlined_call_operand.hbm [shape: bf16[128,128], index: 2, kind: input, shape index: {}]
  %s3 = inlined_call_operand.vmem [shape: f32[1,128], index: 3, kind: input, shape index: {}]
  %s4 = inlined_call_operand.hbm [shape: bf16[128,128], index: 4, kind: input, shape index: {}]
  %s5 = inlined_call_operand.vmem [shape: f32[1,128], index: 5, kind: input, shape index: {}]
  %s6 = inlined_call_operand.hbm [shape: bf16[128,128], index: 6, kind: input, shape index: {}]
  %s7 = inlined_call_operand.vmem [shape: f32[1,128], index: 7, kind: input, shape index: {}]
  %s8 = inlined_call_operand.hbm [shape: f32[128,128], index: 8, kind: input, shape index: {}]
  %s9 = inlined_call_operand.hbm [shape: f32[128,128], index: 9, kind: input, shape index: {}]
  %s10 = inlined_call_operand.vmem [shape: f32[1,128], index: 10, kind: input, shape index: {}]
  %s11 = inlined_call_operand.hbm [shape: f32[1,128], index: 11, kind: output, shape index: {}]
  %s12 = sld [smem:[#allocation0]]
  $region82: #{tpu_custom_call.1} parent=0
    _
  %s14 = ssub.s32 1, %s12
  %s15 = scalar_select 0, %s14, %s12
  $region1: #{tpu_custom_call.1} parent=0
    #allocation2 [shape = 'u8[32768]{0}', space=vmem, size = 0x8000, scoped, tag = 'input window, operand 0, single buffered']
    #allocation3 [shape = 's32[1]{0}', space=sflag, size = 0x4, scoped, tag = 'scoped memory for tpu_custom_call.1']
    #allocation4 [shape = 's32[1]{0}', space=sflag, size = 0x4, scoped, tag = 'scoped memory for tpu_custom_call.1']
    #allocation5 [shape = 'u8[32768]{0}', space=vmem, size = 0x8000, scoped, tag = 'input window, operand 1, single buffered']
    #allocation6 [shape = 's32[1]{0}', space=sflag, size = 0x4, scoped, tag = 'scoped memory for tpu_custom_call.1']
    #allocation7 [shape = 'u8[32768]{0}', space=vmem, size = 0x8000, scoped, tag = 'input window, operand 2, single buffered']
    #allocation8 [shape = 'u8[32768]{0}', space=vmem, size = 0x8000, scoped, tag = 'input window, operand 4, single buffered']
    #allocation9 [shape = 's32[1]{0}', space=sflag, size = 0x4, scoped, tag = 'scoped memory for tpu_custom_call.1']
    #allocation10 [shape = 'u8[32768]{0}', space=vmem, size = 0x8000, scoped, tag = 'input window, operand 6, single buffered']
    #allocation11 [shape = 'u8[65536]{0}', space=vmem, size = 0x10000, scoped, tag = 'input window, operand 8, single buffered']
    #allocation12 [shape = 's32[1]{0}', space=sflag, size = 0x4, scoped, tag = 'scoped memory for tpu_custom_call.1']
    #allocation13 [shape = 'u8[65536]{0}', space=vmem, size = 0x10000, scoped, tag = 'input window, operand 9, single buffered']
    #allocation14 [shape = 'u8[512]{0}', space=vmem, size = 0x400, scoped, tag = 'output window, operand 0, single buffered']
    %16 = vsyncpa [#allocation3], 0
    %17 = vsyncpa [#allocation6], 0
    %18 = vsyncpa [#allocation9], 0
    %19 = vsyncpa [#allocation12], 0
    %20 = vsyncpa [#allocation4], 0
    // Predicated region
    $region2: #{tpu_custom_call.1} parent=1 // pred_check
      _
    $region3: #{tpu_custom_call.1} parent=1 // pred_check_branch
      %22 = sbr.rel (0) target = $region5
    $region4: #{tpu_custom_call.1} parent=1 // pred_region
      %s24 = ssub.s32 1024, 1024
      %25 = vsyncadd [#allocation3], %s24
      %s26 = sshll.u32 [#allocation2], 4
      %s27 = int_to_ptr.vmem [resolvable:$true] %s26
      %32 = dma.hbm_to_vmem [thread:$0]  %s0, 1024, %s27, [#allocation3], 64, 64, 4
    $region5: #{tpu_custom_call.1} parent=1 // pred_fallthru
      _
    // Predicated region
    $region6: #{tpu_custom_call.1} parent=1 // pred_check
      _
    $region7: #{tpu_custom_call.1} parent=1 // pred_check_branch
      %34 = sbr.rel (0) target = $region9
    $region8: #{tpu_custom_call.1} parent=1 // pred_region
      %s36 = ssub.s32 1024, 1024
      %37 = vsyncadd [#allocation6], %s36
      %s38 = sshll.u32 [#allocation5], 4
      %s39 = int_to_ptr.vmem [resolvable:$true] %s38
      %44 = dma.hbm_to_vmem [thread:$0]  %s1, 1024, %s39, [#allocation6], 64, 64, 4
    $region9: #{tpu_custom_call.1} parent=1 // pred_fallthru
      _
    // Predicated region
    $region10: #{tpu_custom_call.1} parent=1 // pred_check
      _
    $region11: #{tpu_custom_call.1} parent=1 // pred_check_branch
      %46 = sbr.rel (0) target = $region13
    $region12: #{tpu_custom_call.1} parent=1 // pred_region
      %s48 = ssub.s32 1024, 1024
      %49 = vsyncadd [#allocation6], %s48
      %s50 = sshll.u32 [#allocation7], 4
      %s51 = int_to_ptr.vmem [resolvable:$true] %s50
      %56 = dma.hbm_to_vmem [thread:$0]  %s2, 1024, %s51, [#allocation6], 64, 64, 4
    $region13: #{tpu_custom_call.1} parent=1 // pred_fallthru
      _
    // Predicated region
    $region14: #{tpu_custom_call.1} parent=1 // pred_check
      _
    $region15: #{tpu_custom_call.1} parent=1 // pred_check_branch
      %58 = sbr.rel (0) target = $region17
    $region16: #{tpu_custom_call.1} parent=1 // pred_region
      _
    $region17: #{tpu_custom_call.1} parent=1 // pred_fallthru
      _
    // Predicated region
    $region18: #{tpu_custom_call.1} parent=1 // pred_check
      _
    $region19: #{tpu_custom_call.1} parent=1 // pred_check_branch
      %60 = sbr.rel (0) target = $region21
    $region20: #{tpu_custom_call.1} parent=1 // pred_region
      %s62 = ssub.s32 1024, 1024
      %63 = vsyncadd [#allocation9], %s62
      %s64 = sshll.u32 [#allocation8], 4
      %s65 = int_to_ptr.vmem [resolvable:$true] %s64
      %70 = dma.hbm_to_vmem [thread:$0]  %s4, 1024, %s65, [#allocation9], 64, 64, 4
    $region21: #{tpu_custom_call.1} parent=1 // pred_fallthru
      _
    // Predicated region
    $region22: #{tpu_custom_call.1} parent=1 // pred_check
      _
    $region23: #{tpu_custom_call.1} parent=1 // pred_check_branch
      %72 = sbr.rel (0) target = $region25
    $region24: #{tpu_custom_call.1} parent=1 // pred_region
      _
    $region25: #{tpu_custom_call.1} parent=1 // pred_fallthru
      _
    // Predicated region
    $region26: #{tpu_custom_call.1} parent=1 // pred_check
      _
    $region27: #{tpu_custom_call.1} parent=1 // pred_check_branch
      %74 = sbr.rel (0) target = $region29
    $region28: #{tpu_custom_call.1} parent=1 // pred_region
      %s76 = ssub.s32 1024, 1024
      %77 = vsyncadd [#allocation9], %s76
      %s78 = sshll.u32 [#allocation10], 4
      %s79 = int_to_ptr.vmem [resolvable:$true] %s78
      %84 = dma.hbm_to_vmem [thread:$0]  %s6, 1024, %s79, [#allocation9], 64, 64, 4
    $region29: #{tpu_custom_call.1} parent=1 // pred_fallthru
      _
    // Predicated region
    $region30: #{tpu_custom_call.1} parent=1 // pred_check
      _
    $region31: #{tpu_custom_call.1} parent=1 // pred_check_branch
      %86 = sbr.rel (0) target = $region33
    $region32: #{tpu_custom_call.1} parent=1 // pred_region
      _
    $region33: #{tpu_custom_call.1} parent=1 // pred_fallthru
      _
    // Predicated region
    $region34: #{tpu_custom_call.1} parent=1 // pred_check
      _
    $region35: #{tpu_custom_call.1} parent=1 // pred_check_branch
      %88 = sbr.rel (0) target = $region37
    $region36: #{tpu_custom_call.1} parent=1 // pred_region
      %s90 = ssub.s32 2048, 2048
      %91 = vsyncadd [#allocation12], %s90
      %s92 = sshll.u32 [#allocation11], 4
      %s93 = int_to_ptr.vmem [resolvable:$true] %s92
      %98 = dma.hbm_to_vmem [thread:$0]  %s8, 2048, %s93, [#allocation12], 128, 128, 8
    $region37: #{tpu_custom_call.1} parent=1 // pred_fallthru
      _
    // Predicated region
    $region38: #{tpu_custom_call.1} parent=1 // pred_check
      _
    $region39: #{tpu_custom_call.1} parent=1 // pred_check_branch
      %100 = sbr.rel (0) target = $region41
    $region40: #{tpu_custom_call.1} parent=1 // pred_region
      %s102 = ssub.s32 2048, 2048
      %103 = vsyncadd [#allocation12], %s102
      %s104 = sshll.u32 [#allocation13], 4
      %s105 = int_to_ptr.vmem [resolvable:$true] %s104
      %110 = dma.hbm_to_vmem [thread:$0]  %s9, 2048, %s105, [#allocation12], 128, 128, 8
    $region41: #{tpu_custom_call.1} parent=1 // pred_fallthru
      _
    // Predicated region
    $region42: #{tpu_custom_call.1} parent=1 // pred_check
      _
    $region43: #{tpu_custom_call.1} parent=1 // pred_check_branch
      %112 = sbr.rel (0) target = $region45
    $region44: #{tpu_custom_call.1} parent=1 // pred_region
      _
    $region45: #{tpu_custom_call.1} parent=1 // pred_fallthru
      _
    // Predicated region
    $region46: #{tpu_custom_call.1} parent=1 // pred_check
      _
    $region47: #{tpu_custom_call.1} parent=1 // pred_check_branch
      %114 = sbr.rel (0) target = $region49
    $region48: #{tpu_custom_call.1} parent=1 // pred_region
      %115 = dma.done [#allocation3], 1024
    $region49: #{tpu_custom_call.1} parent=1 // pred_fallthru
      _
    // Predicated region
    $region50: #{tpu_custom_call.1} parent=1 // pred_check
      _
    $region51: #{tpu_custom_call.1} parent=1 // pred_check_branch
      %117 = sbr.rel (0) target = $region53
    $region52: #{tpu_custom_call.1} parent=1 // pred_region
      %118 = dma.done [#allocation6], 1024
    $region53: #{tpu_custom_call.1} parent=1 // pred_fallthru
      _
    // Predicated region
    $region54: #{tpu_custom_call.1} parent=1 // pred_check
      _
    $region55: #{tpu_custom_call.1} parent=1 // pred_check_branch
      %120 = sbr.rel (0) target = $region57
    $region56: #{tpu_custom_call.1} parent=1 // pred_region
      %121 = dma.done [#allocation6], 1024
    $region57: #{tpu_custom_call.1} parent=1 // pred_fallthru
      _
    // Predicated region
    $region58: #{tpu_custom_call.1} parent=1 // pred_check
      _
    $region59: #{tpu_custom_call.1} parent=1 // pred_check_branch
      %123 = sbr.rel (0) target = $region61
    $region60: #{tpu_custom_call.1} parent=1 // pred_region
      %124 = dma.done [#allocation9], 1024
    $region61: #{tpu_custom_call.1} parent=1 // pred_fallthru
      _
    // Predicated region
    $region62: #{tpu_custom_call.1} parent=1 // pred_check
      _
    $region63: #{tpu_custom_call.1} parent=1 // pred_check_branch
      %126 = sbr.rel (0) target = $region65
    $region64: #{tpu_custom_call.1} parent=1 // pred_region
      %127 = dma.done [#allocation9], 1024
    $region65: #{tpu_custom_call.1} parent=1 // pred_fallthru
      _
    // Predicated region
    $region66: #{tpu_custom_call.1} parent=1 // pred_check
      _
    $region67: #{tpu_custom_call.1} parent=1 // pred_check_branch
      %129 = sbr.rel (0) target = $region69
    $region68: #{tpu_custom_call.1} parent=1 // pred_region
      %130 = dma.done [#allocation12], 2048
    $region69: #{tpu_custom_call.1} parent=1 // pred_fallthru
      _
    // Predicated region
    $region70: #{tpu_custom_call.1} parent=1 // pred_check
      _
    $region71: #{tpu_custom_call.1} parent=1 // pred_check_branch
      %132 = sbr.rel (0) target = $region73
    $region72: #{tpu_custom_call.1} parent=1 // pred_region
      %133 = dma.done [#allocation12], 2048
    $region73: #{tpu_custom_call.1} parent=1 // pred_fallthru
      _
    %v135 = vld [vmem:[#allocation2] sm:$0xf]
    %v136 = vld [vmem:[#allocation2 + $0x4] sm:$0xf]
    %v137 = vld [vmem:[#allocation2 + $0x8] sm:$0xf]
    %v138 = vld [vmem:[#allocation2 + $0xc] sm:$0xf]
    %v139 = vld [vmem:[#allocation2 + $0x10] sm:$0xf]
    %v140 = vld [vmem:[#allocation2 + $0x14] sm:$0xf]
    %v141 = vld [vmem:[#allocation2 + $0x18] sm:$0xf]
    %v142 = vld [vmem:[#allocation2 + $0x1c] sm:$0xf]
    %v143 = vld [vmem:[#allocation2 + $0x20] sm:$0xf]
    %v144 = vld [vmem:[#allocation2 + $0x24] sm:$0xf]
    %v145 = vld [vmem:[#allocation2 + $0x28] sm:$0xf]
    %v146 = vld [vmem:[#allocation2 + $0x2c] sm:$0xf]
    %v147 = vld [vmem:[#allocation2 + $0x30] sm:$0xf]
    %v148 = vld [vmem:[#allocation2 + $0x34] sm:$0xf]
    %v149 = vld [vmem:[#allocation2 + $0x38] sm:$0xf]
    %v150 = vld [vmem:[#allocation2 + $0x3c] sm:$0xf]
    %v151 = vld [vmem:[#allocation5] sm:$0xf]
    %v152 = vld [vmem:[#allocation5 + $0x4] sm:$0xf]
    %v153 = vld [vmem:[#allocation5 + $0x8] sm:$0xf]
    %v154 = vld [vmem:[#allocation5 + $0xc] sm:$0xf]
    %v155 = vld [vmem:[#allocation5 + $0x10] sm:$0xf]
    %v156 = vld [vmem:[#allocation5 + $0x14] sm:$0xf]
    %v157 = vld [vmem:[#allocation5 + $0x18] sm:$0xf]
    %v158 = vld [vmem:[#allocation5 + $0x1c] sm:$0xf]
    %v159 = vld [vmem:[#allocation5 + $0x20] sm:$0xf]
    %v160 = vld [vmem:[#allocation5 + $0x24] sm:$0xf]
    %v161 = vld [vmem:[#allocation5 + $0x28] sm:$0xf]
    %v162 = vld [vmem:[#allocation5 + $0x2c] sm:$0xf]
    %v163 = vld [vmem:[#allocation5 + $0x30] sm:$0xf]
    %v164 = vld [vmem:[#allocation5 + $0x34] sm:$0xf]
    %v165 = vld [vmem:[#allocation5 + $0x38] sm:$0xf]
    %v166 = vld [vmem:[#allocation5 + $0x3c] sm:$0xf]
    %v183 = vunpack.c.l.b16 %v135
    %v184 = vunpack.c.l.b16 %v136
    %v185 = vunpack.c.l.b16 %v137
    %v186 = vunpack.c.l.b16 %v138
    %v187 = vunpack.c.l.b16 %v139
    %v188 = vunpack.c.l.b16 %v140
    %v189 = vunpack.c.l.b16 %v141
    %v190 = vunpack.c.l.b16 %v142
    %v191 = vunpack.c.l.b16 %v143
    %v192 = vunpack.c.l.b16 %v144
    %v193 = vunpack.c.l.b16 %v145
    %v194 = vunpack.c.l.b16 %v146
    %v195 = vunpack.c.l.b16 %v147
    %v196 = vunpack.c.l.b16 %v148
    %v197 = vunpack.c.l.b16 %v149
    %v198 = vunpack.c.l.b16 %v150
    %v199 = vpack.c.b16 %v184, %v183
    %v200 = vpack.c.b16 %v186, %v185
    %v201 = vpack.c.b16 %v188, %v187
    %v202 = vpack.c.b16 %v190, %v189
    %v203 = vpack.c.b16 %v192, %v191
    %v204 = vpack.c.b16 %v194, %v193
    %v205 = vpack.c.b16 %v196, %v195
    %v206 = vpack.c.b16 %v198, %v197
    %v231 = vunpack.c.l.b16 %v151
    %v232 = vunpack.c.l.b16 %v152
    %v233 = vunpack.c.l.b16 %v153
    %v234 = vunpack.c.l.b16 %v154
    %v235 = vunpack.c.l.b16 %v155
    %v236 = vunpack.c.l.b16 %v156
    %v237 = vunpack.c.l.b16 %v157
    %v238 = vunpack.c.l.b16 %v158
    %v239 = vunpack.c.l.b16 %v159
    %v240 = vunpack.c.l.b16 %v160
    %v241 = vunpack.c.l.b16 %v161
    %v242 = vunpack.c.l.b16 %v162
    %v243 = vunpack.c.l.b16 %v163
    %v244 = vunpack.c.l.b16 %v164
    %v245 = vunpack.c.l.b16 %v165
    %v246 = vunpack.c.l.b16 %v166
    %v247 = vpack.c.b16 %v232, %v231
    %v248 = vpack.c.b16 %v234, %v233
    %v249 = vpack.c.b16 %v236, %v235
    %v250 = vpack.c.b16 %v238, %v237
    %v251 = vpack.c.b16 %v240, %v239
    %v252 = vpack.c.b16 %v242, %v241
    %v253 = vpack.c.b16 %v244, %v243
    %v254 = vpack.c.b16 %v246, %v245
    %263 = vmatprep.subr.bf16.mxu0 0
    %264 = vmatpush1.bf16.msra.mxu0 %v254
    %265 = vmatprep.subr.bf16.mxu0 0
    %266 = vmatpush1.bf16.msra.mxu0 %v253
    %267 = vmatprep.subr.bf16.mxu0 0
    %268 = vmatpush1.bf16.msra.mxu0 %v252
    %269 = vmatprep.subr.bf16.mxu0 0
    %270 = vmatpush1.bf16.msra.mxu0 %v251
    %271 = vmatprep.subr.bf16.mxu0 0
    %272 = vmatpush1.bf16.msra.mxu0 %v250
    %273 = vmatprep.subr.bf16.mxu0 0
    %274 = vmatpush1.bf16.msra.mxu0 %v249
    %275 = vmatprep.subr.bf16.mxu0 0
    %276 = vmatpush1.bf16.msra.mxu0 %v248
    %277 = vmatprep.subr.bf16.mxu0 0
    %278 = vmatpush1.bf16.msra.mxu0 %v247
    %279 = vmatprep.subr.bf16.mxu0 0
    %280 = vmatpush2.bf16.msra.mxu0 0
    %281 = vmatprep.subr.bf16.mxu0 0
    %282 = vmatpush2.bf16.msra.mxu0 0
    %283 = vmatprep.subr.bf16.mxu0 0
    %284 = vmatpush2.bf16.msra.mxu0 0
    %285 = vmatprep.subr.bf16.mxu0 0
    %286 = vmatpush2.bf16.msra.mxu0 0
    %287 = vmatprep.subr.bf16.mxu0 0
    %288 = vmatpush2.bf16.msra.mxu0 0
    %289 = vmatprep.subr.bf16.mxu0 0
    %290 = vmatpush2.bf16.msra.mxu0 0
    %291 = vmatprep.subr.bf16.mxu0 0
    %292 = vmatpush2.bf16.msra.mxu0 0
    %293 = vmatprep.subr.bf16.mxu0 0
    %294 = vmatpush2.bf16.msra.mxu0 0
    %295 = vmatprep.mubr.bf16.mxu0 0
    %296 = vmatmul.mubr.bf16.gmra.mxu0 %v199
    %v297 = vpop.f32.mrf.mxu0
    %v298 = vadd.f32 0.0, %v297
    %v299 = vpop.f32.mrf.mxu0
    %v300 = vpop.f32.mrf.mxu0
    %v301 = vadd.f32 0.0, %v300
    %v302 = vpop.f32.mrf.mxu0
    %303 = vmatprep.mubr.bf16.mxu0 0
    %304 = vmatmul.mubr.bf16.gmra.mxu0 %v200
    %v305 = vpop.f32.mrf.mxu0
    %v306 = vadd.f32 0.0, %v305
    %v307 = vpop.f32.mrf.mxu0
    %v308 = vpop.f32.mrf.mxu0
    %v309 = vadd.f32 0.0, %v308
    %v310 = vpop.f32.mrf.mxu0
    %311 = vmatprep.mubr.bf16.mxu0 0
    %312 = vmatmul.mubr.bf16.gmra.mxu0 %v201
    %v313 = vpop.f32.mrf.mxu0
    %v314 = vadd.f32 0.0, %v313
    %v315 = vpop.f32.mrf.mxu0
    %v316 = vpop.f32.mrf.mxu0
    %v317 = vadd.f32 0.0, %v316
    %v318 = vpop.f32.mrf.mxu0
    %319 = vmatprep.mubr.bf16.mxu0 0
    %320 = vmatmul.mubr.bf16.gmra.mxu0 %v202
    %v321 = vpop.f32.mrf.mxu0
    %v322 = vadd.f32 0.0, %v321
    %v323 = vpop.f32.mrf.mxu0
    %v324 = vpop.f32.mrf.mxu0
    %v325 = vadd.f32 0.0, %v324
    %v326 = vpop.f32.mrf.mxu0
    %327 = vmatprep.mubr.bf16.mxu0 0
    %328 = vmatmul.mubr.bf16.gmra.mxu0 %v203
    %v329 = vpop.f32.mrf.mxu0
    %v330 = vadd.f32 0.0, %v329
    %v331 = vpop.f32.mrf.mxu0
    %v332 = vpop.f32.mrf.mxu0
    %v333 = vadd.f32 0.0, %v332
    %v334 = vpop.f32.mrf.mxu0
    %335 = vmatprep.mubr.bf16.mxu0 0
    %336 = vmatmul.mubr.bf16.gmra.mxu0 %v204
    %v337 = vpop.f32.mrf.mxu0
    %v338 = vadd.f32 0.0, %v337
    %v339 = vpop.f32.mrf.mxu0
    %v340 = vpop.f32.mrf.mxu0
    %v341 = vadd.f32 0.0, %v340
    %v342 = vpop.f32.mrf.mxu0
    %343 = vmatprep.mubr.bf16.mxu0 0
    %344 = vmatmul.mubr.bf16.gmra.mxu0 %v205
    %v345 = vpop.f32.mrf.mxu0
    %v346 = vadd.f32 0.0, %v345
    %v347 = vpop.f32.mrf.mxu0
    %v348 = vpop.f32.mrf.mxu0
    %v349 = vadd.f32 0.0, %v348
    %v350 = vpop.f32.mrf.mxu0
    %351 = vmatprep.mubr.bf16.mxu0 0
    %352 = vmatmul.mubr.bf16.gmra.mxu0 %v206
    %v353 = vpop.f32.mrf.mxu0
    %v354 = vadd.f32 0.0, %v353
    %v355 = vpop.f32.mrf.mxu0
    %v356 = vpop.f32.mrf.mxu0
    %v357 = vadd.f32 0.0, %v356
    %v358 = vpop.f32.mrf.mxu0
    %359 = vdwg.mxu0
    %v360 = vpack.c.bf16 %v301, %v298
    %v361 = vpack.c.bf16 %v309, %v306
    %v362 = vpack.c.bf16 %v317, %v314
    %v363 = vpack.c.bf16 %v325, %v322
    %v364 = vpack.c.bf16 %v333, %v330
    %v365 = vpack.c.bf16 %v341, %v338
    %v366 = vpack.c.bf16 %v349, %v346
    %v367 = vpack.c.bf16 %v357, %v354
    %v368 = vld [vmem:[#allocation7] sm:$0xf]
    %v369 = vld [vmem:[#allocation7 + $0x4] sm:$0xf]
    %v370 = vld [vmem:[#allocation7 + $0x8] sm:$0xf]
    %v371 = vld [vmem:[#allocation7 + $0xc] sm:$0xf]
    %v372 = vld [vmem:[#allocation7 + $0x10] sm:$0xf]
    %v373 = vld [vmem:[#allocation7 + $0x14] sm:$0xf]
    %v374 = vld [vmem:[#allocation7 + $0x18] sm:$0xf]
    %v375 = vld [vmem:[#allocation7 + $0x1c] sm:$0xf]
    %v376 = vld [vmem:[#allocation7 + $0x20] sm:$0xf]
    %v377 = vld [vmem:[#allocation7 + $0x24] sm:$0xf]
    %v378 = vld [vmem:[#allocation7 + $0x28] sm:$0xf]
    %v379 = vld [vmem:[#allocation7 + $0x2c] sm:$0xf]
    %v380 = vld [vmem:[#allocation7 + $0x30] sm:$0xf]
    %v381 = vld [vmem:[#allocation7 + $0x34] sm:$0xf]
    %v382 = vld [vmem:[#allocation7 + $0x38] sm:$0xf]
    %v383 = vld [vmem:[#allocation7 + $0x3c] sm:$0xf]
    %v384 = vld [vmem:[%s3] sm:$0x1]
    %v386 = vlaneseq
    %v387 = vshrl.u32 %v386, 7
    %v388 = vsub.s32 0, %v387
    %v389 = vrot.slane %v384, %v388
    %v407 = vunpack.c.l.b16 %v368
    %v408 = vunpack.c.l.b16 %v369
    %v409 = vunpack.c.l.b16 %v370
    %v410 = vunpack.c.l.b16 %v371
    %v411 = vunpack.c.l.b16 %v372
    %v412 = vunpack.c.l.b16 %v373
    %v413 = vunpack.c.l.b16 %v374
    %v414 = vunpack.c.l.b16 %v375
    %v415 = vunpack.c.l.b16 %v376
    %v416 = vunpack.c.l.b16 %v377
    %v417 = vunpack.c.l.b16 %v378
    %v418 = vunpack.c.l.b16 %v379
    %v419 = vunpack.c.l.b16 %v380
    %v420 = vunpack.c.l.b16 %v381
    %v421 = vunpack.c.l.b16 %v382
    %v422 = vunpack.c.l.b16 %v383
    %v423 = vpack.c.b16 %v408, %v407
    %v424 = vpack.c.b16 %v410, %v409
    %v425 = vpack.c.b16 %v412, %v411
    %v426 = vpack.c.b16 %v414, %v413
    %v427 = vpack.c.b16 %v416, %v415
    %v428 = vpack.c.b16 %v418, %v417
    %v429 = vpack.c.b16 %v420, %v419
    %v430 = vpack.c.b16 %v422, %v421
    %439 = vmatprep.subr.bf16.mxu0 0
    %440 = vmatpush1.bf16.msra.mxu0 %v430
    %441 = vmatprep.subr.bf16.mxu0 0
    %442 = vmatpush1.bf16.msra.mxu0 %v429
    %443 = vmatprep.subr.bf16.mxu0 0
    %444 = vmatpush1.bf16.msra.mxu0 %v428
    %445 = vmatprep.subr.bf16.mxu0 0
    %446 = vmatpush1.bf16.msra.mxu0 %v427
    %447 = vmatprep.subr.bf16.mxu0 0
    %448 = vmatpush1.bf16.msra.mxu0 %v426
    %449 = vmatprep.subr.bf16.mxu0 0
    %450 = vmatpush1.bf16.msra.mxu0 %v425
    %451 = vmatprep.subr.bf16.mxu0 0
    %452 = vmatpush1.bf16.msra.mxu0 %v424
    %453 = vmatprep.subr.bf16.mxu0 0
    %454 = vmatpush1.bf16.msra.mxu0 %v423
    %455 = vmatprep.subr.bf16.mxu0 0
    %456 = vmatpush2.bf16.msra.mxu0 0
    %457 = vmatprep.subr.bf16.mxu0 0
    %458 = vmatpush2.bf16.msra.mxu0 0
    %459 = vmatprep.subr.bf16.mxu0 0
    %460 = vmatpush2.bf16.msra.mxu0 0
    %461 = vmatprep.subr.bf16.mxu0 0
    %462 = vmatpush2.bf16.msra.mxu0 0
    %463 = vmatprep.subr.bf16.mxu0 0
    %464 = vmatpush2.bf16.msra.mxu0 0
    %465 = vmatprep.subr.bf16.mxu0 0
    %466 = vmatpush2.bf16.msra.mxu0 0
    %467 = vmatprep.subr.bf16.mxu0 0
    %468 = vmatpush2.bf16.msra.mxu0 0
    %469 = vmatprep.subr.bf16.mxu0 0
    %470 = vmatpush2.bf16.msra.mxu0 0
    %471 = vmatprep.mubr.bf16.mxu0 0
    %472 = vmatmul.mubr.bf16.gmra.mxu0 %v360
    %v473 = vpop.f32.mrf.mxu0
    %v474 = vadd.f32 %v389, %v473
    %v475 = vpop.f32.mrf.mxu0
    %v476 = vpop.f32.mrf.mxu0
    %v477 = vadd.f32 %v389, %v476
    %v478 = vpop.f32.mrf.mxu0
    %479 = vmatprep.mubr.bf16.mxu0 0
    %480 = vmatmul.mubr.bf16.gmra.mxu0 %v361
    %v481 = vpop.f32.mrf.mxu0
    %v482 = vadd.f32 %v389, %v481
    %v483 = vpop.f32.mrf.mxu0
    %v484 = vpop.f32.mrf.mxu0
    %v485 = vadd.f32 %v389, %v484
    %v486 = vpop.f32.mrf.mxu0
    %487 = vmatprep.mubr.bf16.mxu0 0
    %488 = vmatmul.mubr.bf16.gmra.mxu0 %v362
    %v489 = vpop.f32.mrf.mxu0
    %v490 = vadd.f32 %v389, %v489
    %v491 = vpop.f32.mrf.mxu0
    %v492 = vpop.f32.mrf.mxu0
    %v493 = vadd.f32 %v389, %v492
    %v494 = vpop.f32.mrf.mxu0
    %495 = vmatprep.mubr.bf16.mxu0 0
    %496 = vmatmul.mubr.bf16.gmra.mxu0 %v363
    %v497 = vpop.f32.mrf.mxu0
    %v498 = vadd.f32 %v389, %v497
    %v499 = vpop.f32.mrf.mxu0
    %v500 = vpop.f32.mrf.mxu0
    %v501 = vadd.f32 %v389, %v500
    %v502 = vpop.f32.mrf.mxu0
    %503 = vmatprep.mubr.bf16.mxu0 0
    %504 = vmatmul.mubr.bf16.gmra.mxu0 %v364
    %v505 = vpop.f32.mrf.mxu0
    %v506 = vadd.f32 %v389, %v505
    %v507 = vpop.f32.mrf.mxu0
    %v508 = vpop.f32.mrf.mxu0
    %v509 = vadd.f32 %v389, %v508
    %v510 = vpop.f32.mrf.mxu0
    %511 = vmatprep.mubr.bf16.mxu0 0
    %512 = vmatmul.mubr.bf16.gmra.mxu0 %v365
    %v513 = vpop.f32.mrf.mxu0
    %v514 = vadd.f32 %v389, %v513
    %v515 = vpop.f32.mrf.mxu0
    %v516 = vpop.f32.mrf.mxu0
    %v517 = vadd.f32 %v389, %v516
    %v518 = vpop.f32.mrf.mxu0
    %519 = vmatprep.mubr.bf16.mxu0 0
    %520 = vmatmul.mubr.bf16.gmra.mxu0 %v366
    %v521 = vpop.f32.mrf.mxu0
    %v522 = vadd.f32 %v389, %v521
    %v523 = vpop.f32.mrf.mxu0
    %v524 = vpop.f32.mrf.mxu0
    %v525 = vadd.f32 %v389, %v524
    %v526 = vpop.f32.mrf.mxu0
    %527 = vmatprep.mubr.bf16.mxu0 0
    %528 = vmatmul.mubr.bf16.gmra.mxu0 %v367
    %v529 = vpop.f32.mrf.mxu0
    %v530 = vadd.f32 %v389, %v529
    %v531 = vpop.f32.mrf.mxu0
    %v532 = vpop.f32.mrf.mxu0
    %v533 = vadd.f32 %v389, %v532
    %v534 = vpop.f32.mrf.mxu0
    %535 = vdwg.mxu0
    %v536 = vmul.f32 %v474, %v474
    %v537 = vmul.f32 %v477, %v477
    %v538 = vmul.f32 %v482, %v482
    %v539 = vmul.f32 %v485, %v485
    %v540 = vmul.f32 %v490, %v490
    %v541 = vmul.f32 %v493, %v493
    %v542 = vmul.f32 %v498, %v498
    %v543 = vmul.f32 %v501, %v501
    %v544 = vmul.f32 %v506, %v506
    %v545 = vmul.f32 %v509, %v509
    %v546 = vmul.f32 %v514, %v514
    %v547 = vmul.f32 %v517, %v517
    %v548 = vmul.f32 %v522, %v522
    %v549 = vmul.f32 %v525, %v525
    %v550 = vmul.f32 %v530, %v530
    %v551 = vmul.f32 %v533, %v533
    %552 = vadd.xlane.f32.xlu0 %v536
    %v553 = vpop.xlane.xlu0 %552
    %554 = vadd.xlane.f32.xlu0 %v537
    %v555 = vpop.xlane.xlu0 %554
    %556 = vadd.xlane.f32.xlu0 %v538
    %v557 = vpop.xlane.xlu0 %556
    %558 = vadd.xlane.f32.xlu0 %v539
    %v559 = vpop.xlane.xlu0 %558
    %560 = vadd.xlane.f32.xlu0 %v540
    %v561 = vpop.xlane.xlu0 %560
    %562 = vadd.xlane.f32.xlu0 %v541
    %v563 = vpop.xlane.xlu0 %562
    %564 = vadd.xlane.f32.xlu0 %v542
    %v565 = vpop.xlane.xlu0 %564
    %566 = vadd.xlane.f32.xlu0 %v543
    %v567 = vpop.xlane.xlu0 %566
    %568 = vadd.xlane.f32.xlu0 %v544
    %v569 = vpop.xlane.xlu0 %568
    %570 = vadd.xlane.f32.xlu0 %v545
    %v571 = vpop.xlane.xlu0 %570
    %572 = vadd.xlane.f32.xlu0 %v546
    %v573 = vpop.xlane.xlu0 %572
    %574 = vadd.xlane.f32.xlu0 %v547
    %v575 = vpop.xlane.xlu0 %574
    %576 = vadd.xlane.f32.xlu0 %v548
    %v577 = vpop.xlane.xlu0 %576
    %578 = vadd.xlane.f32.xlu0 %v549
    %v579 = vpop.xlane.xlu0 %578
    %580 = vadd.xlane.f32.xlu0 %v550
    %v581 = vpop.xlane.xlu0 %580
    %582 = vadd.xlane.f32.xlu0 %v551
    %v583 = vpop.xlane.xlu0 %582
    %v584 = vmax.f32 %v553, 1e-24
    %v585 = vmax.f32 %v555, 1e-24
    %v586 = vmax.f32 %v557, 1e-24
    %v587 = vmax.f32 %v559, 1e-24
    %v588 = vmax.f32 %v561, 1e-24
    %v589 = vmax.f32 %v563, 1e-24
    %v590 = vmax.f32 %v565, 1e-24
    %v591 = vmax.f32 %v567, 1e-24
    %v592 = vmax.f32 %v569, 1e-24
    %v593 = vmax.f32 %v571, 1e-24
    %v594 = vmax.f32 %v573, 1e-24
    %v595 = vmax.f32 %v575, 1e-24
    %v596 = vmax.f32 %v577, 1e-24
    %v597 = vmax.f32 %v579, 1e-24
    %v598 = vmax.f32 %v581, 1e-24
    %v599 = vmax.f32 %v583, 1e-24
    %v600 = vrsqrt.pop %v584
    %v601 = vrsqrt.pop %v585
    %v602 = vrsqrt.pop %v586
    %v603 = vrsqrt.pop %v587
    %v604 = vrsqrt.pop %v588
    %v605 = vrsqrt.pop %v589
    %v606 = vrsqrt.pop %v590
    %v607 = vrsqrt.pop %v591
    %v608 = vrsqrt.pop %v592
    %v609 = vrsqrt.pop %v593
    %v610 = vrsqrt.pop %v594
    %v611 = vrsqrt.pop %v595
    %v612 = vrsqrt.pop %v596
    %v613 = vrsqrt.pop %v597
    %v614 = vrsqrt.pop %v598
    %v615 = vrsqrt.pop %v599
    %v616 = vmul.f32 %v474, %v600
    %v617 = vmul.f32 %v477, %v601
    %v618 = vmul.f32 %v482, %v602
    %v619 = vmul.f32 %v485, %v603
    %v620 = vmul.f32 %v490, %v604
    %v621 = vmul.f32 %v493, %v605
    %v622 = vmul.f32 %v498, %v606
    %v623 = vmul.f32 %v501, %v607
    %v624 = vmul.f32 %v506, %v608
    %v625 = vmul.f32 %v509, %v609
    %v626 = vmul.f32 %v514, %v610
    %v627 = vmul.f32 %v517, %v611
    %v628 = vmul.f32 %v522, %v612
    %v629 = vmul.f32 %v525, %v613
    %v630 = vmul.f32 %v530, %v614
    %v631 = vmul.f32 %v533, %v615
    %v632 = vmax.f32 %v616, 0.0
    %v633 = vmax.f32 %v617, 0.0
    %v634 = vmax.f32 %v618, 0.0
    %v635 = vmax.f32 %v619, 0.0
    %v636 = vmax.f32 %v620, 0.0
    %v637 = vmax.f32 %v621, 0.0
    %v638 = vmax.f32 %v622, 0.0
    %v639 = vmax.f32 %v623, 0.0
    %v640 = vmax.f32 %v624, 0.0
    %v641 = vmax.f32 %v625, 0.0
    %v642 = vmax.f32 %v626, 0.0
    %v643 = vmax.f32 %v627, 0.0
    %v644 = vmax.f32 %v628, 0.0
    %v645 = vmax.f32 %v629, 0.0
    %v646 = vmax.f32 %v630, 0.0
    %v647 = vmax.f32 %v631, 0.0
    %v648 = vpack.c.bf16 %v633, %v632
    %v649 = vpack.c.bf16 %v635, %v634
    %v650 = vpack.c.bf16 %v637, %v636
    %v651 = vpack.c.bf16 %v639, %v638
    %v652 = vpack.c.bf16 %v641, %v640
    %v653 = vpack.c.bf16 %v643, %v642
    %v654 = vpack.c.bf16 %v645, %v644
    %v655 = vpack.c.bf16 %v647, %v646
    %656 = vmatprep.subr.bf16.mxu0 0
    %657 = vmatpush1.bf16.msra.mxu0 %v655
    %658 = vmatprep.subr.bf16.mxu0 0
    %659 = vmatpush1.bf16.msra.mxu0 %v654
    %660 = vmatprep.subr.bf16.mxu0 0
    %661 = vmatpush1.bf16.msra.mxu0 %v653
    %662 = vmatprep.subr.bf16.mxu0 0
    %663 = vmatpush1.bf16.msra.mxu0 %v652
    %664 = vmatprep.subr.bf16.mxu0 0
    %665 = vmatpush1.bf16.msra.mxu0 %v651
    %666 = vmatprep.subr.bf16.mxu0 0
    %667 = vmatpush1.bf16.msra.mxu0 %v650
    %668 = vmatprep.subr.bf16.mxu0 0
    %669 = vmatpush1.bf16.msra.mxu0 %v649
    %670 = vmatprep.subr.bf16.mxu0 0
    %671 = vmatpush1.bf16.msra.mxu0 %v648
    %672 = vmatprep.subr.bf16.mxu0 0
    %673 = vmatpush2.bf16.msra.mxu0 0
    %674 = vmatprep.subr.bf16.mxu0 0
    %675 = vmatpush2.bf16.msra.mxu0 0
    %676 = vmatprep.subr.bf16.mxu0 0
    %677 = vmatpush2.bf16.msra.mxu0 0
    %678 = vmatprep.subr.bf16.mxu0 0
    %679 = vmatpush2.bf16.msra.mxu0 0
    %680 = vmatprep.subr.bf16.mxu0 0
    %681 = vmatpush2.bf16.msra.mxu0 0
    %682 = vmatprep.subr.bf16.mxu0 0
    %683 = vmatpush2.bf16.msra.mxu0 0
    %684 = vmatprep.subr.bf16.mxu0 0
    %685 = vmatpush2.bf16.msra.mxu0 0
    %686 = vmatprep.subr.bf16.mxu0 0
    %687 = vmatpush2.bf16.msra.mxu0 0
    %688 = vmatprep.mubr.bf16.mxu0 0
    %689 = vmatmul.mubr.bf16.gmra.mxu0 %v199
    %v690 = vpop.f32.mrf.mxu0
    %v691 = vadd.f32 0.0, %v690
    %v692 = vpop.f32.mrf.mxu0
    %v693 = vpop.f32.mrf.mxu0
    %v694 = vadd.f32 0.0, %v693
    %v695 = vpop.f32.mrf.mxu0
    %696 = vmatprep.mubr.bf16.mxu0 0
    %697 = vmatmul.mubr.bf16.gmra.mxu0 %v200
    %v698 = vpop.f32.mrf.mxu0
    %v699 = vadd.f32 0.0, %v698
    %v700 = vpop.f32.mrf.mxu0
    %v701 = vpop.f32.mrf.mxu0
    %v702 = vadd.f32 0.0, %v701
    %v703 = vpop.f32.mrf.mxu0
    %704 = vmatprep.mubr.bf16.mxu0 0
    %705 = vmatmul.mubr.bf16.gmra.mxu0 %v201
    %v706 = vpop.f32.mrf.mxu0
    %v707 = vadd.f32 0.0, %v706
    %v708 = vpop.f32.mrf.mxu0
    %v709 = vpop.f32.mrf.mxu0
    %v710 = vadd.f32 0.0, %v709
    %v711 = vpop.f32.mrf.mxu0
    %712 = vmatprep.mubr.bf16.mxu0 0
    %713 = vmatmul.mubr.bf16.gmra.mxu0 %v202
    %v714 = vpop.f32.mrf.mxu0
    %v715 = vadd.f32 0.0, %v714
    %v716 = vpop.f32.mrf.mxu0
    %v717 = vpop.f32.mrf.mxu0
    %v718 = vadd.f32 0.0, %v717
    %v719 = vpop.f32.mrf.mxu0
    %720 = vmatprep.mubr.bf16.mxu0 0
    %721 = vmatmul.mubr.bf16.gmra.mxu0 %v203
    %v722 = vpop.f32.mrf.mxu0
    %v723 = vadd.f32 0.0, %v722
    %v724 = vpop.f32.mrf.mxu0
    %v725 = vpop.f32.mrf.mxu0
    %v726 = vadd.f32 0.0, %v725
    %v727 = vpop.f32.mrf.mxu0
    %728 = vmatprep.mubr.bf16.mxu0 0
    %729 = vmatmul.mubr.bf16.gmra.mxu0 %v204
    %v730 = vpop.f32.mrf.mxu0
    %v731 = vadd.f32 0.0, %v730
    %v732 = vpop.f32.mrf.mxu0
    %v733 = vpop.f32.mrf.mxu0
    %v734 = vadd.f32 0.0, %v733
    %v735 = vpop.f32.mrf.mxu0
    %736 = vmatprep.mubr.bf16.mxu0 0
    %737 = vmatmul.mubr.bf16.gmra.mxu0 %v205
    %v738 = vpop.f32.mrf.mxu0
    %v739 = vadd.f32 0.0, %v738
    %v740 = vpop.f32.mrf.mxu0
    %v741 = vpop.f32.mrf.mxu0
    %v742 = vadd.f32 0.0, %v741
    %v743 = vpop.f32.mrf.mxu0
    %744 = vmatprep.mubr.bf16.mxu0 0
    %745 = vmatmul.mubr.bf16.gmra.mxu0 %v206
    %v746 = vpop.f32.mrf.mxu0
    %v747 = vadd.f32 0.0, %v746
    %v748 = vpop.f32.mrf.mxu0
    %v749 = vpop.f32.mrf.mxu0
    %v750 = vadd.f32 0.0, %v749
    %v751 = vpop.f32.mrf.mxu0
    %752 = vdwg.mxu0
    %v753 = vpack.c.bf16 %v694, %v691
    %v754 = vpack.c.bf16 %v702, %v699
    %v755 = vpack.c.bf16 %v710, %v707
    %v756 = vpack.c.bf16 %v718, %v715
    %v757 = vpack.c.bf16 %v726, %v723
    %v758 = vpack.c.bf16 %v734, %v731
    %v759 = vpack.c.bf16 %v742, %v739
    %v760 = vpack.c.bf16 %v750, %v747
    %v761 = vld [vmem:[#allocation8] sm:$0xf]
    %v762 = vld [vmem:[#allocation8 + $0x4] sm:$0xf]
    %v763 = vld [vmem:[#allocation8 + $0x8] sm:$0xf]
    %v764 = vld [vmem:[#allocation8 + $0xc] sm:$0xf]
    %v765 = vld [vmem:[#allocation8 + $0x10] sm:$0xf]
    %v766 = vld [vmem:[#allocation8 + $0x14] sm:$0xf]
    %v767 = vld [vmem:[#allocation8 + $0x18] sm:$0xf]
    %v768 = vld [vmem:[#allocation8 + $0x1c] sm:$0xf]
    %v769 = vld [vmem:[#allocation8 + $0x20] sm:$0xf]
    %v770 = vld [vmem:[#allocation8 + $0x24] sm:$0xf]
    %v771 = vld [vmem:[#allocation8 + $0x28] sm:$0xf]
    %v772 = vld [vmem:[#allocation8 + $0x2c] sm:$0xf]
    %v773 = vld [vmem:[#allocation8 + $0x30] sm:$0xf]
    %v774 = vld [vmem:[#allocation8 + $0x34] sm:$0xf]
    %v775 = vld [vmem:[#allocation8 + $0x38] sm:$0xf]
    %v776 = vld [vmem:[#allocation8 + $0x3c] sm:$0xf]
    %v777 = vld [vmem:[%s5] sm:$0x1]
    %v779 = vlaneseq
    %v780 = vshrl.u32 %v779, 7
    %v781 = vsub.s32 0, %v780
    %v782 = vrot.slane %v777, %v781
    %v800 = vunpack.c.l.b16 %v761
    %v801 = vunpack.c.l.b16 %v762
    %v802 = vunpack.c.l.b16 %v763
    %v803 = vunpack.c.l.b16 %v764
    %v804 = vunpack.c.l.b16 %v765
    %v805 = vunpack.c.l.b16 %v766
    %v806 = vunpack.c.l.b16 %v767
    %v807 = vunpack.c.l.b16 %v768
    %v808 = vunpack.c.l.b16 %v769
    %v809 = vunpack.c.l.b16 %v770
    %v810 = vunpack.c.l.b16 %v771
    %v811 = vunpack.c.l.b16 %v772
    %v812 = vunpack.c.l.b16 %v773
    %v813 = vunpack.c.l.b16 %v774
    %v814 = vunpack.c.l.b16 %v775
    %v815 = vunpack.c.l.b16 %v776
    %v816 = vpack.c.b16 %v801, %v800
    %v817 = vpack.c.b16 %v803, %v802
    %v818 = vpack.c.b16 %v805, %v804
    %v819 = vpack.c.b16 %v807, %v806
    %v820 = vpack.c.b16 %v809, %v808
    %v821 = vpack.c.b16 %v811, %v810
    %v822 = vpack.c.b16 %v813, %v812
    %v823 = vpack.c.b16 %v815, %v814
    %832 = vmatprep.subr.bf16.mxu0 0
    %833 = vmatpush1.bf16.msra.mxu0 %v823
    %834 = vmatprep.subr.bf16.mxu0 0
    %835 = vmatpush1.bf16.msra.mxu0 %v822
    %836 = vmatprep.subr.bf16.mxu0 0
    %837 = vmatpush1.bf16.msra.mxu0 %v821
    %838 = vmatprep.subr.bf16.mxu0 0
    %839 = vmatpush1.bf16.msra.mxu0 %v820
    %840 = vmatprep.subr.bf16.mxu0 0
    %841 = vmatpush1.bf16.msra.mxu0 %v819
    %842 = vmatprep.subr.bf16.mxu0 0
    %843 = vmatpush1.bf16.msra.mxu0 %v818
    %844 = vmatprep.subr.bf16.mxu0 0
    %845 = vmatpush1.bf16.msra.mxu0 %v817
    %846 = vmatprep.subr.bf16.mxu0 0
    %847 = vmatpush1.bf16.msra.mxu0 %v816
    %848 = vmatprep.subr.bf16.mxu0 0
    %849 = vmatpush2.bf16.msra.mxu0 0
    %850 = vmatprep.subr.bf16.mxu0 0
    %851 = vmatpush2.bf16.msra.mxu0 0
    %852 = vmatprep.subr.bf16.mxu0 0
    %853 = vmatpush2.bf16.msra.mxu0 0
    %854 = vmatprep.subr.bf16.mxu0 0
    %855 = vmatpush2.bf16.msra.mxu0 0
    %856 = vmatprep.subr.bf16.mxu0 0
    %857 = vmatpush2.bf16.msra.mxu0 0
    %858 = vmatprep.subr.bf16.mxu0 0
    %859 = vmatpush2.bf16.msra.mxu0 0
    %860 = vmatprep.subr.bf16.mxu0 0
    %861 = vmatpush2.bf16.msra.mxu0 0
    %862 = vmatprep.subr.bf16.mxu0 0
    %863 = vmatpush2.bf16.msra.mxu0 0
    %864 = vmatprep.mubr.bf16.mxu0 0
    %865 = vmatmul.mubr.bf16.gmra.mxu0 %v753
    %v866 = vpop.f32.mrf.mxu0
    %v867 = vadd.f32 %v782, %v866
    %v868 = vpop.f32.mrf.mxu0
    %v869 = vpop.f32.mrf.mxu0
    %v870 = vadd.f32 %v782, %v869
    %v871 = vpop.f32.mrf.mxu0
    %872 = vmatprep.mubr.bf16.mxu0 0
    %873 = vmatmul.mubr.bf16.gmra.mxu0 %v754
    %v874 = vpop.f32.mrf.mxu0
    %v875 = vadd.f32 %v782, %v874
    %v876 = vpop.f32.mrf.mxu0
    %v877 = vpop.f32.mrf.mxu0
    %v878 = vadd.f32 %v782, %v877
    %v879 = vpop.f32.mrf.mxu0
    %880 = vmatprep.mubr.bf16.mxu0 0
    %881 = vmatmul.mubr.bf16.gmra.mxu0 %v755
    %v882 = vpop.f32.mrf.mxu0
    %v883 = vadd.f32 %v782, %v882
    %v884 = vpop.f32.mrf.mxu0
    %v885 = vpop.f32.mrf.mxu0
    %v886 = vadd.f32 %v782, %v885
    %v887 = vpop.f32.mrf.mxu0
    %888 = vmatprep.mubr.bf16.mxu0 0
    %889 = vmatmul.mubr.bf16.gmra.mxu0 %v756
    %v890 = vpop.f32.mrf.mxu0
    %v891 = vadd.f32 %v782, %v890
    %v892 = vpop.f32.mrf.mxu0
    %v893 = vpop.f32.mrf.mxu0
    %v894 = vadd.f32 %v782, %v893
    %v895 = vpop.f32.mrf.mxu0
    %896 = vmatprep.mubr.bf16.mxu0 0
    %897 = vmatmul.mubr.bf16.gmra.mxu0 %v757
    %v898 = vpop.f32.mrf.mxu0
    %v899 = vadd.f32 %v782, %v898
    %v900 = vpop.f32.mrf.mxu0
    %v901 = vpop.f32.mrf.mxu0
    %v902 = vadd.f32 %v782, %v901
    %v903 = vpop.f32.mrf.mxu0
    %904 = vmatprep.mubr.bf16.mxu0 0
    %905 = vmatmul.mubr.bf16.gmra.mxu0 %v758
    %v906 = vpop.f32.mrf.mxu0
    %v907 = vadd.f32 %v782, %v906
    %v908 = vpop.f32.mrf.mxu0
    %v909 = vpop.f32.mrf.mxu0
    %v910 = vadd.f32 %v782, %v909
    %v911 = vpop.f32.mrf.mxu0
    %912 = vmatprep.mubr.bf16.mxu0 0
    %913 = vmatmul.mubr.bf16.gmra.mxu0 %v759
    %v914 = vpop.f32.mrf.mxu0
    %v915 = vadd.f32 %v782, %v914
    %v916 = vpop.f32.mrf.mxu0
    %v917 = vpop.f32.mrf.mxu0
    %v918 = vadd.f32 %v782, %v917
    %v919 = vpop.f32.mrf.mxu0
    %920 = vmatprep.mubr.bf16.mxu0 0
    %921 = vmatmul.mubr.bf16.gmra.mxu0 %v760
    %v922 = vpop.f32.mrf.mxu0
    %v923 = vadd.f32 %v782, %v922
    %v924 = vpop.f32.mrf.mxu0
    %v925 = vpop.f32.mrf.mxu0
    %v926 = vadd.f32 %v782, %v925
    %v927 = vpop.f32.mrf.mxu0
    %928 = vdwg.mxu0
    %v929 = vmul.f32 %v867, %v867
    %v930 = vmul.f32 %v870, %v870
    %v931 = vmul.f32 %v875, %v875
    %v932 = vmul.f32 %v878, %v878
    %v933 = vmul.f32 %v883, %v883
    %v934 = vmul.f32 %v886, %v886
    %v935 = vmul.f32 %v891, %v891
    %v936 = vmul.f32 %v894, %v894
    %v937 = vmul.f32 %v899, %v899
    %v938 = vmul.f32 %v902, %v902
    %v939 = vmul.f32 %v907, %v907
    %v940 = vmul.f32 %v910, %v910
    %v941 = vmul.f32 %v915, %v915
    %v942 = vmul.f32 %v918, %v918
    %v943 = vmul.f32 %v923, %v923
    %v944 = vmul.f32 %v926, %v926
    %945 = vadd.xlane.f32.xlu0 %v929
    %v946 = vpop.xlane.xlu0 %945
    %947 = vadd.xlane.f32.xlu0 %v930
    %v948 = vpop.xlane.xlu0 %947
    %949 = vadd.xlane.f32.xlu0 %v931
    %v950 = vpop.xlane.xlu0 %949
    %951 = vadd.xlane.f32.xlu0 %v932
    %v952 = vpop.xlane.xlu0 %951
    %953 = vadd.xlane.f32.xlu0 %v933
    %v954 = vpop.xlane.xlu0 %953
    %955 = vadd.xlane.f32.xlu0 %v934
    %v956 = vpop.xlane.xlu0 %955
    %957 = vadd.xlane.f32.xlu0 %v935
    %v958 = vpop.xlane.xlu0 %957
    %959 = vadd.xlane.f32.xlu0 %v936
    %v960 = vpop.xlane.xlu0 %959
    %961 = vadd.xlane.f32.xlu0 %v937
    %v962 = vpop.xlane.xlu0 %961
    %963 = vadd.xlane.f32.xlu0 %v938
    %v964 = vpop.xlane.xlu0 %963
    %965 = vadd.xlane.f32.xlu0 %v939
    %v966 = vpop.xlane.xlu0 %965
    %967 = vadd.xlane.f32.xlu0 %v940
    %v968 = vpop.xlane.xlu0 %967
    %969 = vadd.xlane.f32.xlu0 %v941
    %v970 = vpop.xlane.xlu0 %969
    %971 = vadd.xlane.f32.xlu0 %v942
    %v972 = vpop.xlane.xlu0 %971
    %973 = vadd.xlane.f32.xlu0 %v943
    %v974 = vpop.xlane.xlu0 %973
    %975 = vadd.xlane.f32.xlu0 %v944
    %v976 = vpop.xlane.xlu0 %975
    %v977 = vmax.f32 %v946, 1e-24
    %v978 = vmax.f32 %v948, 1e-24
    %v979 = vmax.f32 %v950, 1e-24
    %v980 = vmax.f32 %v952, 1e-24
    %v981 = vmax.f32 %v954, 1e-24
    %v982 = vmax.f32 %v956, 1e-24
    %v983 = vmax.f32 %v958, 1e-24
    %v984 = vmax.f32 %v960, 1e-24
    %v985 = vmax.f32 %v962, 1e-24
    %v986 = vmax.f32 %v964, 1e-24
    %v987 = vmax.f32 %v966, 1e-24
    %v988 = vmax.f32 %v968, 1e-24
    %v989 = vmax.f32 %v970, 1e-24
    %v990 = vmax.f32 %v972, 1e-24
    %v991 = vmax.f32 %v974, 1e-24
    %v992 = vmax.f32 %v976, 1e-24
    %v993 = vrsqrt.pop %v977
    %v994 = vrsqrt.pop %v978
    %v995 = vrsqrt.pop %v979
    %v996 = vrsqrt.pop %v980
    %v997 = vrsqrt.pop %v981
    %v998 = vrsqrt.pop %v982
    %v999 = vrsqrt.pop %v983
    %v1000 = vrsqrt.pop %v984
    %v1001 = vrsqrt.pop %v985
    %v1002 = vrsqrt.pop %v986
    %v1003 = vrsqrt.pop %v987
    %v1004 = vrsqrt.pop %v988
    %v1005 = vrsqrt.pop %v989
    %v1006 = vrsqrt.pop %v990
    %v1007 = vrsqrt.pop %v991
    %v1008 = vrsqrt.pop %v992
    %v1009 = vmul.f32 %v867, %v993
    %v1010 = vmul.f32 %v870, %v994
    %v1011 = vmul.f32 %v875, %v995
    %v1012 = vmul.f32 %v878, %v996
    %v1013 = vmul.f32 %v883, %v997
    %v1014 = vmul.f32 %v886, %v998
    %v1015 = vmul.f32 %v891, %v999
    %v1016 = vmul.f32 %v894, %v1000
    %v1017 = vmul.f32 %v899, %v1001
    %v1018 = vmul.f32 %v902, %v1002
    %v1019 = vmul.f32 %v907, %v1003
    %v1020 = vmul.f32 %v910, %v1004
    %v1021 = vmul.f32 %v915, %v1005
    %v1022 = vmul.f32 %v918, %v1006
    %v1023 = vmul.f32 %v923, %v1007
    %v1024 = vmul.f32 %v926, %v1008
    %v1025 = vmax.f32 %v1009, 0.0
    %v1026 = vmax.f32 %v1010, 0.0
    %v1027 = vmax.f32 %v1011, 0.0
    %v1028 = vmax.f32 %v1012, 0.0
    %v1029 = vmax.f32 %v1013, 0.0
    %v1030 = vmax.f32 %v1014, 0.0
    %v1031 = vmax.f32 %v1015, 0.0
    %v1032 = vmax.f32 %v1016, 0.0
    %v1033 = vmax.f32 %v1017, 0.0
    %v1034 = vmax.f32 %v1018, 0.0
    %v1035 = vmax.f32 %v1019, 0.0
    %v1036 = vmax.f32 %v1020, 0.0
    %v1037 = vmax.f32 %v1021, 0.0
    %v1038 = vmax.f32 %v1022, 0.0
    %v1039 = vmax.f32 %v1023, 0.0
    %v1040 = vmax.f32 %v1024, 0.0
    %v1041 = vpack.c.bf16 %v1026, %v1025
    %v1042 = vpack.c.bf16 %v1028, %v1027
    %v1043 = vpack.c.bf16 %v1030, %v1029
    %v1044 = vpack.c.bf16 %v1032, %v1031
    %v1045 = vpack.c.bf16 %v1034, %v1033
    %v1046 = vpack.c.bf16 %v1036, %v1035
    %v1047 = vpack.c.bf16 %v1038, %v1037
    %v1048 = vpack.c.bf16 %v1040, %v1039
    %1049 = vmatprep.subr.bf16.mxu0 0
    %1050 = vmatpush1.bf16.msra.mxu0 %v1048
    %1051 = vmatprep.subr.bf16.mxu0 0
    %1052 = vmatpush1.bf16.msra.mxu0 %v1047
    %1053 = vmatprep.subr.bf16.mxu0 0
    %1054 = vmatpush1.bf16.msra.mxu0 %v1046
    %1055 = vmatprep.subr.bf16.mxu0 0
    %1056 = vmatpush1.bf16.msra.mxu0 %v1045
    %1057 = vmatprep.subr.bf16.mxu0 0
    %1058 = vmatpush1.bf16.msra.mxu0 %v1044
    %1059 = vmatprep.subr.bf16.mxu0 0
    %1060 = vmatpush1.bf16.msra.mxu0 %v1043
    %1061 = vmatprep.subr.bf16.mxu0 0
    %1062 = vmatpush1.bf16.msra.mxu0 %v1042
    %1063 = vmatprep.subr.bf16.mxu0 0
    %1064 = vmatpush1.bf16.msra.mxu0 %v1041
    %1065 = vmatprep.subr.bf16.mxu0 0
    %1066 = vmatpush2.bf16.msra.mxu0 0
    %1067 = vmatprep.subr.bf16.mxu0 0
    %1068 = vmatpush2.bf16.msra.mxu0 0
    %1069 = vmatprep.subr.bf16.mxu0 0
    %1070 = vmatpush2.bf16.msra.mxu0 0
    %1071 = vmatprep.subr.bf16.mxu0 0
    %1072 = vmatpush2.bf16.msra.mxu0 0
    %1073 = vmatprep.subr.bf16.mxu0 0
    %1074 = vmatpush2.bf16.msra.mxu0 0
    %1075 = vmatprep.subr.bf16.mxu0 0
    %1076 = vmatpush2.bf16.msra.mxu0 0
    %1077 = vmatprep.subr.bf16.mxu0 0
    %1078 = vmatpush2.bf16.msra.mxu0 0
    %1079 = vmatprep.subr.bf16.mxu0 0
    %1080 = vmatpush2.bf16.msra.mxu0 0
    %1081 = vmatprep.mubr.bf16.mxu0 0
    %1082 = vmatmul.mubr.bf16.gmra.mxu0 %v199
    %v1083 = vpop.f32.mrf.mxu0
    %v1084 = vadd.f32 0.0, %v1083
    %v1085 = vpop.f32.mrf.mxu0
    %v1086 = vpop.f32.mrf.mxu0
    %v1087 = vadd.f32 0.0, %v1086
    %v1088 = vpop.f32.mrf.mxu0
    %1089 = vmatprep.mubr.bf16.mxu0 0
    %1090 = vmatmul.mubr.bf16.gmra.mxu0 %v200
    %v1091 = vpop.f32.mrf.mxu0
    %v1092 = vadd.f32 0.0, %v1091
    %v1093 = vpop.f32.mrf.mxu0
    %v1094 = vpop.f32.mrf.mxu0
    %v1095 = vadd.f32 0.0, %v1094
    %v1096 = vpop.f32.mrf.mxu0
    %1097 = vmatprep.mubr.bf16.mxu0 0
    %1098 = vmatmul.mubr.bf16.gmra.mxu0 %v201
    %v1099 = vpop.f32.mrf.mxu0
    %v1100 = vadd.f32 0.0, %v1099
    %v1101 = vpop.f32.mrf.mxu0
    %v1102 = vpop.f32.mrf.mxu0
    %v1103 = vadd.f32 0.0, %v1102
    %v1104 = vpop.f32.mrf.mxu0
    %1105 = vmatprep.mubr.bf16.mxu0 0
    %1106 = vmatmul.mubr.bf16.gmra.mxu0 %v202
    %v1107 = vpop.f32.mrf.mxu0
    %v1108 = vadd.f32 0.0, %v1107
    %v1109 = vpop.f32.mrf.mxu0
    %v1110 = vpop.f32.mrf.mxu0
    %v1111 = vadd.f32 0.0, %v1110
    %v1112 = vpop.f32.mrf.mxu0
    %1113 = vmatprep.mubr.bf16.mxu0 0
    %1114 = vmatmul.mubr.bf16.gmra.mxu0 %v203
    %v1115 = vpop.f32.mrf.mxu0
    %v1116 = vadd.f32 0.0, %v1115
    %v1117 = vpop.f32.mrf.mxu0
    %v1118 = vpop.f32.mrf.mxu0
    %v1119 = vadd.f32 0.0, %v1118
    %v1120 = vpop.f32.mrf.mxu0
    %1121 = vmatprep.mubr.bf16.mxu0 0
    %1122 = vmatmul.mubr.bf16.gmra.mxu0 %v204
    %v1123 = vpop.f32.mrf.mxu0
    %v1124 = vadd.f32 0.0, %v1123
    %v1125 = vpop.f32.mrf.mxu0
    %v1126 = vpop.f32.mrf.mxu0
    %v1127 = vadd.f32 0.0, %v1126
    %v1128 = vpop.f32.mrf.mxu0
    %1129 = vmatprep.mubr.bf16.mxu0 0
    %1130 = vmatmul.mubr.bf16.gmra.mxu0 %v205
    %v1131 = vpop.f32.mrf.mxu0
    %v1132 = vadd.f32 0.0, %v1131
    %v1133 = vpop.f32.mrf.mxu0
    %v1134 = vpop.f32.mrf.mxu0
    %v1135 = vadd.f32 0.0, %v1134
    %v1136 = vpop.f32.mrf.mxu0
    %1137 = vmatprep.mubr.bf16.mxu0 0
    %1138 = vmatmul.mubr.bf16.gmra.mxu0 %v206
    %v1139 = vpop.f32.mrf.mxu0
    %v1140 = vadd.f32 0.0, %v1139
    %v1141 = vpop.f32.mrf.mxu0
    %v1142 = vpop.f32.mrf.mxu0
    %v1143 = vadd.f32 0.0, %v1142
    %v1144 = vpop.f32.mrf.mxu0
    %1145 = vdwg.mxu0
    %v1146 = vpack.c.bf16 %v1087, %v1084
    %v1147 = vpack.c.bf16 %v1095, %v1092
    %v1148 = vpack.c.bf16 %v1103, %v1100
    %v1149 = vpack.c.bf16 %v1111, %v1108
    %v1150 = vpack.c.bf16 %v1119, %v1116
    %v1151 = vpack.c.bf16 %v1127, %v1124
    %v1152 = vpack.c.bf16 %v1135, %v1132
    %v1153 = vpack.c.bf16 %v1143, %v1140
    %v1154 = vld [vmem:[#allocation10] sm:$0xf]
    %v1155 = vld [vmem:[#allocation10 + $0x4] sm:$0xf]
    %v1156 = vld [vmem:[#allocation10 + $0x8] sm:$0xf]
    %v1157 = vld [vmem:[#allocation10 + $0xc] sm:$0xf]
    %v1158 = vld [vmem:[#allocation10 + $0x10] sm:$0xf]
    %v1159 = vld [vmem:[#allocation10 + $0x14] sm:$0xf]
    %v1160 = vld [vmem:[#allocation10 + $0x18] sm:$0xf]
    %v1161 = vld [vmem:[#allocation10 + $0x1c] sm:$0xf]
    %v1162 = vld [vmem:[#allocation10 + $0x20] sm:$0xf]
    %v1163 = vld [vmem:[#allocation10 + $0x24] sm:$0xf]
    %v1164 = vld [vmem:[#allocation10 + $0x28] sm:$0xf]
    %v1165 = vld [vmem:[#allocation10 + $0x2c] sm:$0xf]
    %v1166 = vld [vmem:[#allocation10 + $0x30] sm:$0xf]
    %v1167 = vld [vmem:[#allocation10 + $0x34] sm:$0xf]
    %v1168 = vld [vmem:[#allocation10 + $0x38] sm:$0xf]
    %v1169 = vld [vmem:[#allocation10 + $0x3c] sm:$0xf]
    %v1170 = vld [vmem:[%s7] sm:$0x1]
    %v1172 = vlaneseq
    %v1173 = vshrl.u32 %v1172, 7
    %v1174 = vsub.s32 0, %v1173
    %v1175 = vrot.slane %v1170, %v1174
    %v1193 = vunpack.c.l.b16 %v1154
    %v1194 = vunpack.c.l.b16 %v1155
    %v1195 = vunpack.c.l.b16 %v1156
    %v1196 = vunpack.c.l.b16 %v1157
    %v1197 = vunpack.c.l.b16 %v1158
    %v1198 = vunpack.c.l.b16 %v1159
    %v1199 = vunpack.c.l.b16 %v1160
    %v1200 = vunpack.c.l.b16 %v1161
    %v1201 = vunpack.c.l.b16 %v1162
    %v1202 = vunpack.c.l.b16 %v1163
    %v1203 = vunpack.c.l.b16 %v1164
    %v1204 = vunpack.c.l.b16 %v1165
    %v1205 = vunpack.c.l.b16 %v1166
    %v1206 = vunpack.c.l.b16 %v1167
    %v1207 = vunpack.c.l.b16 %v1168
    %v1208 = vunpack.c.l.b16 %v1169
    %v1209 = vpack.c.b16 %v1194, %v1193
    %v1210 = vpack.c.b16 %v1196, %v1195
    %v1211 = vpack.c.b16 %v1198, %v1197
    %v1212 = vpack.c.b16 %v1200, %v1199
    %v1213 = vpack.c.b16 %v1202, %v1201
    %v1214 = vpack.c.b16 %v1204, %v1203
    %v1215 = vpack.c.b16 %v1206, %v1205
    %v1216 = vpack.c.b16 %v1208, %v1207
    %1225 = vmatprep.subr.bf16.mxu0 0
    %1226 = vmatpush1.bf16.msra.mxu0 %v1216
    %1227 = vmatprep.subr.bf16.mxu0 0
    %1228 = vmatpush1.bf16.msra.mxu0 %v1215
    %1229 = vmatprep.subr.bf16.mxu0 0
    %1230 = vmatpush1.bf16.msra.mxu0 %v1214
    %1231 = vmatprep.subr.bf16.mxu0 0
    %1232 = vmatpush1.bf16.msra.mxu0 %v1213
    %1233 = vmatprep.subr.bf16.mxu0 0
    %1234 = vmatpush1.bf16.msra.mxu0 %v1212
    %1235 = vmatprep.subr.bf16.mxu0 0
    %1236 = vmatpush1.bf16.msra.mxu0 %v1211
    %1237 = vmatprep.subr.bf16.mxu0 0
    %1238 = vmatpush1.bf16.msra.mxu0 %v1210
    %1239 = vmatprep.subr.bf16.mxu0 0
    %1240 = vmatpush1.bf16.msra.mxu0 %v1209
    %1241 = vmatprep.subr.bf16.mxu0 0
    %1242 = vmatpush2.bf16.msra.mxu0 0
    %1243 = vmatprep.subr.bf16.mxu0 0
    %1244 = vmatpush2.bf16.msra.mxu0 0
    %1245 = vmatprep.subr.bf16.mxu0 0
    %1246 = vmatpush2.bf16.msra.mxu0 0
    %1247 = vmatprep.subr.bf16.mxu0 0
    %1248 = vmatpush2.bf16.msra.mxu0 0
    %1249 = vmatprep.subr.bf16.mxu0 0
    %1250 = vmatpush2.bf16.msra.mxu0 0
    %1251 = vmatprep.subr.bf16.mxu0 0
    %1252 = vmatpush2.bf16.msra.mxu0 0
    %1253 = vmatprep.subr.bf16.mxu0 0
    %1254 = vmatpush2.bf16.msra.mxu0 0
    %1255 = vmatprep.subr.bf16.mxu0 0
    %1256 = vmatpush2.bf16.msra.mxu0 0
    %1257 = vmatprep.mubr.bf16.mxu0 0
    %1258 = vmatmul.mubr.bf16.gmra.mxu0 %v1146
    %v1259 = vpop.f32.mrf.mxu0
    %v1260 = vadd.f32 %v1175, %v1259
    %v1261 = vpop.f32.mrf.mxu0
    %v1262 = vpop.f32.mrf.mxu0
    %v1263 = vadd.f32 %v1175, %v1262
    %v1264 = vpop.f32.mrf.mxu0
    %1265 = vmatprep.mubr.bf16.mxu0 0
    %1266 = vmatmul.mubr.bf16.gmra.mxu0 %v1147
    %v1267 = vpop.f32.mrf.mxu0
    %v1268 = vadd.f32 %v1175, %v1267
    %v1269 = vpop.f32.mrf.mxu0
    %v1270 = vpop.f32.mrf.mxu0
    %v1271 = vadd.f32 %v1175, %v1270
    %v1272 = vpop.f32.mrf.mxu0
    %1273 = vmatprep.mubr.bf16.mxu0 0
    %1274 = vmatmul.mubr.bf16.gmra.mxu0 %v1148
    %v1275 = vpop.f32.mrf.mxu0
    %v1276 = vadd.f32 %v1175, %v1275
    %v1277 = vpop.f32.mrf.mxu0
    %v1278 = vpop.f32.mrf.mxu0
    %v1279 = vadd.f32 %v1175, %v1278
    %v1280 = vpop.f32.mrf.mxu0
    %1281 = vmatprep.mubr.bf16.mxu0 0
    %1282 = vmatmul.mubr.bf16.gmra.mxu0 %v1149
    %v1283 = vpop.f32.mrf.mxu0
    %v1284 = vadd.f32 %v1175, %v1283
    %v1285 = vpop.f32.mrf.mxu0
    %v1286 = vpop.f32.mrf.mxu0
    %v1287 = vadd.f32 %v1175, %v1286
    %v1288 = vpop.f32.mrf.mxu0
    %1289 = vmatprep.mubr.bf16.mxu0 0
    %1290 = vmatmul.mubr.bf16.gmra.mxu0 %v1150
    %v1291 = vpop.f32.mrf.mxu0
    %v1292 = vadd.f32 %v1175, %v1291
    %v1293 = vpop.f32.mrf.mxu0
    %v1294 = vpop.f32.mrf.mxu0
    %v1295 = vadd.f32 %v1175, %v1294
    %v1296 = vpop.f32.mrf.mxu0
    %1297 = vmatprep.mubr.bf16.mxu0 0
    %1298 = vmatmul.mubr.bf16.gmra.mxu0 %v1151
    %v1299 = vpop.f32.mrf.mxu0
    %v1300 = vadd.f32 %v1175, %v1299
    %v1301 = vpop.f32.mrf.mxu0
    %v1302 = vpop.f32.mrf.mxu0
    %v1303 = vadd.f32 %v1175, %v1302
    %v1304 = vpop.f32.mrf.mxu0
    %1305 = vmatprep.mubr.bf16.mxu0 0
    %1306 = vmatmul.mubr.bf16.gmra.mxu0 %v1152
    %v1307 = vpop.f32.mrf.mxu0
    %v1308 = vadd.f32 %v1175, %v1307
    %v1309 = vpop.f32.mrf.mxu0
    %v1310 = vpop.f32.mrf.mxu0
    %v1311 = vadd.f32 %v1175, %v1310
    %v1312 = vpop.f32.mrf.mxu0
    %1313 = vmatprep.mubr.bf16.mxu0 0
    %1314 = vmatmul.mubr.bf16.gmra.mxu0 %v1153
    %v1315 = vpop.f32.mrf.mxu0
    %v1316 = vadd.f32 %v1175, %v1315
    %v1317 = vpop.f32.mrf.mxu0
    %v1318 = vpop.f32.mrf.mxu0
    %v1319 = vadd.f32 %v1175, %v1318
    %v1320 = vpop.f32.mrf.mxu0
    %1321 = vdwg.mxu0
    %v1322 = vmul.f32 %v1260, %v1260
    %v1323 = vmul.f32 %v1263, %v1263
    %v1324 = vmul.f32 %v1268, %v1268
    %v1325 = vmul.f32 %v1271, %v1271
    %v1326 = vmul.f32 %v1276, %v1276
    %v1327 = vmul.f32 %v1279, %v1279
    %v1328 = vmul.f32 %v1284, %v1284
    %v1329 = vmul.f32 %v1287, %v1287
    %v1330 = vmul.f32 %v1292, %v1292
    %v1331 = vmul.f32 %v1295, %v1295
    %v1332 = vmul.f32 %v1300, %v1300
    %v1333 = vmul.f32 %v1303, %v1303
    %v1334 = vmul.f32 %v1308, %v1308
    %v1335 = vmul.f32 %v1311, %v1311
    %v1336 = vmul.f32 %v1316, %v1316
    %v1337 = vmul.f32 %v1319, %v1319
    %1338 = vadd.xlane.f32.xlu0 %v1322
    %v1339 = vpop.xlane.xlu0 %1338
    %1340 = vadd.xlane.f32.xlu0 %v1323
    %v1341 = vpop.xlane.xlu0 %1340
    %1342 = vadd.xlane.f32.xlu0 %v1324
    %v1343 = vpop.xlane.xlu0 %1342
    %1344 = vadd.xlane.f32.xlu0 %v1325
    %v1345 = vpop.xlane.xlu0 %1344
    %1346 = vadd.xlane.f32.xlu0 %v1326
    %v1347 = vpop.xlane.xlu0 %1346
    %1348 = vadd.xlane.f32.xlu0 %v1327
    %v1349 = vpop.xlane.xlu0 %1348
    %1350 = vadd.xlane.f32.xlu0 %v1328
    %v1351 = vpop.xlane.xlu0 %1350
    %1352 = vadd.xlane.f32.xlu0 %v1329
    %v1353 = vpop.xlane.xlu0 %1352
    %1354 = vadd.xlane.f32.xlu0 %v1330
    %v1355 = vpop.xlane.xlu0 %1354
    %1356 = vadd.xlane.f32.xlu0 %v1331
    %v1357 = vpop.xlane.xlu0 %1356
    %1358 = vadd.xlane.f32.xlu0 %v1332
    %v1359 = vpop.xlane.xlu0 %1358
    %1360 = vadd.xlane.f32.xlu0 %v1333
    %v1361 = vpop.xlane.xlu0 %1360
    %1362 = vadd.xlane.f32.xlu0 %v1334
    %v1363 = vpop.xlane.xlu0 %1362
    %1364 = vadd.xlane.f32.xlu0 %v1335
    %v1365 = vpop.xlane.xlu0 %1364
    %1366 = vadd.xlane.f32.xlu0 %v1336
    %v1367 = vpop.xlane.xlu0 %1366
    %1368 = vadd.xlane.f32.xlu0 %v1337
    %v1369 = vpop.xlane.xlu0 %1368
    %v1370 = vmax.f32 %v1339, 1e-24
    %v1371 = vmax.f32 %v1341, 1e-24
    %v1372 = vmax.f32 %v1343, 1e-24
    %v1373 = vmax.f32 %v1345, 1e-24
    %v1374 = vmax.f32 %v1347, 1e-24
    %v1375 = vmax.f32 %v1349, 1e-24
    %v1376 = vmax.f32 %v1351, 1e-24
    %v1377 = vmax.f32 %v1353, 1e-24
    %v1378 = vmax.f32 %v1355, 1e-24
    %v1379 = vmax.f32 %v1357, 1e-24
    %v1380 = vmax.f32 %v1359, 1e-24
    %v1381 = vmax.f32 %v1361, 1e-24
    %v1382 = vmax.f32 %v1363, 1e-24
    %v1383 = vmax.f32 %v1365, 1e-24
    %v1384 = vmax.f32 %v1367, 1e-24
    %v1385 = vmax.f32 %v1369, 1e-24
    %v1386 = vrsqrt.pop %v1370
    %v1387 = vrsqrt.pop %v1371
    %v1388 = vrsqrt.pop %v1372
    %v1389 = vrsqrt.pop %v1373
    %v1390 = vrsqrt.pop %v1374
    %v1391 = vrsqrt.pop %v1375
    %v1392 = vrsqrt.pop %v1376
    %v1393 = vrsqrt.pop %v1377
    %v1394 = vrsqrt.pop %v1378
    %v1395 = vrsqrt.pop %v1379
    %v1396 = vrsqrt.pop %v1380
    %v1397 = vrsqrt.pop %v1381
    %v1398 = vrsqrt.pop %v1382
    %v1399 = vrsqrt.pop %v1383
    %v1400 = vrsqrt.pop %v1384
    %v1401 = vrsqrt.pop %v1385
    %v1402 = vmul.f32 %v1260, %v1386
    %v1403 = vmul.f32 %v1263, %v1387
    %v1404 = vmul.f32 %v1268, %v1388
    %v1405 = vmul.f32 %v1271, %v1389
    %v1406 = vmul.f32 %v1276, %v1390
    %v1407 = vmul.f32 %v1279, %v1391
    %v1408 = vmul.f32 %v1284, %v1392
    %v1409 = vmul.f32 %v1287, %v1393
    %v1410 = vmul.f32 %v1292, %v1394
    %v1411 = vmul.f32 %v1295, %v1395
    %v1412 = vmul.f32 %v1300, %v1396
    %v1413 = vmul.f32 %v1303, %v1397
    %v1414 = vmul.f32 %v1308, %v1398
    %v1415 = vmul.f32 %v1311, %v1399
    %v1416 = vmul.f32 %v1316, %v1400
    %v1417 = vmul.f32 %v1319, %v1401
    %v1418 = vmax.f32 %v1402, 0.0
    %v1419 = vmax.f32 %v1403, 0.0
    %v1420 = vmax.f32 %v1404, 0.0
    %v1421 = vmax.f32 %v1405, 0.0
    %v1422 = vmax.f32 %v1406, 0.0
    %v1423 = vmax.f32 %v1407, 0.0
    %v1424 = vmax.f32 %v1408, 0.0
    %v1425 = vmax.f32 %v1409, 0.0
    %v1426 = vmax.f32 %v1410, 0.0
    %v1427 = vmax.f32 %v1411, 0.0
    %v1428 = vmax.f32 %v1412, 0.0
    %v1429 = vmax.f32 %v1413, 0.0
    %v1430 = vmax.f32 %v1414, 0.0
    %v1431 = vmax.f32 %v1415, 0.0
    %v1432 = vmax.f32 %v1416, 0.0
    %v1433 = vmax.f32 %v1417, 0.0
    %v1434 = vlaneseq
    %v1435 = vshrl.u32 %v1434, 7
    %v1436 = vadd.s32 %v1435, 8
    %v1437 = vadd.s32 %v1435, 16
    %v1438 = vadd.s32 %v1435, 24
    %v1439 = vadd.s32 %v1435, 32
    %v1440 = vadd.s32 %v1435, 40
    %v1441 = vadd.s32 %v1435, 48
    %v1442 = vadd.s32 %v1435, 56
    %v1443 = vadd.s32 %v1435, 64
    %v1444 = vadd.s32 %v1435, 72
    %v1445 = vadd.s32 %v1435, 80
    %v1446 = vadd.s32 %v1435, 88
    %v1447 = vadd.s32 %v1435, 96
    %v1448 = vadd.s32 %v1435, 104
    %v1449 = vadd.s32 %v1435, 112
    %v1450 = vadd.s32 %v1435, 120
    %vm1451 = vcmp.lt.s32.totalorder %v1435, 16
    %vm1452 = vcmp.lt.s32.totalorder %v1436, 16
    %vm1453 = vcmp.lt.s32.totalorder %v1437, 16
    %vm1454 = vcmp.lt.s32.totalorder %v1438, 16
    %vm1455 = vcmp.lt.s32.totalorder %v1439, 16
    %vm1456 = vcmp.lt.s32.totalorder %v1440, 16
    %vm1457 = vcmp.lt.s32.totalorder %v1441, 16
    %vm1458 = vcmp.lt.s32.totalorder %v1442, 16
    %vm1459 = vcmp.lt.s32.totalorder %v1443, 16
    %vm1460 = vcmp.lt.s32.totalorder %v1444, 16
    %vm1461 = vcmp.lt.s32.totalorder %v1445, 16
    %vm1462 = vcmp.lt.s32.totalorder %v1446, 16
    %vm1463 = vcmp.lt.s32.totalorder %v1447, 16
    %vm1464 = vcmp.lt.s32.totalorder %v1448, 16
    %vm1465 = vcmp.lt.s32.totalorder %v1449, 16
    %vm1466 = vcmp.lt.s32.totalorder %v1450, 16
    %v1467 = vsel %vm1451, 1, 0
    %v1468 = vsel %vm1452, 1, 0
    %v1469 = vsel %vm1453, 1, 0
    %v1470 = vsel %vm1454, 1, 0
    %v1471 = vsel %vm1455, 1, 0
    %v1472 = vsel %vm1456, 1, 0
    %v1473 = vsel %vm1457, 1, 0
    %v1474 = vsel %vm1458, 1, 0
    %v1475 = vsel %vm1459, 1, 0
    %v1476 = vsel %vm1460, 1, 0
    %v1477 = vsel %vm1461, 1, 0
    %v1478 = vsel %vm1462, 1, 0
    %v1479 = vsel %vm1463, 1, 0
    %v1480 = vsel %vm1464, 1, 0
    %v1481 = vsel %vm1465, 1, 0
    %v1482 = vsel %vm1466, 1, 0
    %vm1483 = vcmp.eq.s32.totalorder %v1467, 1
    %vm1484 = vcmp.eq.s32.totalorder %v1468, 1
    %vm1485 = vcmp.eq.s32.totalorder %v1469, 1
    %vm1486 = vcmp.eq.s32.totalorder %v1470, 1
    %vm1487 = vcmp.eq.s32.totalorder %v1471, 1
    %vm1488 = vcmp.eq.s32.totalorder %v1472, 1
    %vm1489 = vcmp.eq.s32.totalorder %v1473, 1
    %vm1490 = vcmp.eq.s32.totalorder %v1474, 1
    %vm1491 = vcmp.eq.s32.totalorder %v1475, 1
    %vm1492 = vcmp.eq.s32.totalorder %v1476, 1
    %vm1493 = vcmp.eq.s32.totalorder %v1477, 1
    %vm1494 = vcmp.eq.s32.totalorder %v1478, 1
    %vm1495 = vcmp.eq.s32.totalorder %v1479, 1
    %vm1496 = vcmp.eq.s32.totalorder %v1480, 1
    %vm1497 = vcmp.eq.s32.totalorder %v1481, 1
    %vm1498 = vcmp.eq.s32.totalorder %v1482, 1
    %v1499 = vsel %vm1483, %v1418, 0.0
    %v1500 = vsel %vm1484, %v1419, 0.0
    %v1501 = vsel %vm1485, %v1420, 0.0
    %v1502 = vsel %vm1486, %v1421, 0.0
    %v1503 = vsel %vm1487, %v1422, 0.0
    %v1504 = vsel %vm1488, %v1423, 0.0
    %v1505 = vsel %vm1489, %v1424, 0.0
    %v1506 = vsel %vm1490, %v1425, 0.0
    %v1507 = vsel %vm1491, %v1426, 0.0
    %v1508 = vsel %vm1492, %v1427, 0.0
    %v1509 = vsel %vm1493, %v1428, 0.0
    %v1510 = vsel %vm1494, %v1429, 0.0
    %v1511 = vsel %vm1495, %v1430, 0.0
    %v1512 = vsel %vm1496, %v1431, 0.0
    %v1513 = vsel %vm1497, %v1432, 0.0
    %v1514 = vsel %vm1498, %v1433, 0.0
    %v1515 = vmax.f32 %v1499, %v1503
    %v1516 = vmax.f32 %v1500, %v1504
    %v1517 = vmax.f32 %v1501, %v1505
    %v1518 = vmax.f32 %v1502, %v1506
    %v1519 = vmax.f32 %v1515, %v1507
    %v1520 = vmax.f32 %v1516, %v1508
    %v1521 = vmax.f32 %v1517, %v1509
    %v1522 = vmax.f32 %v1518, %v1510
    %v1523 = vmax.f32 %v1519, %v1511
    %v1524 = vmax.f32 %v1520, %v1512
    %v1525 = vmax.f32 %v1521, %v1513
    %v1526 = vmax.f32 %v1522, %v1514
    %v1527 = vmax.f32 %v1523, %v1524
    %v1528 = vmax.f32 %v1525, %v1526
    %v1529 = vmax.f32 %v1527, %v1528
    %v1530 = vrot.slane %v1529, 4
    %v1531 = vmax.f32 %v1529, %v1530
    %v1532 = vrot.slane %v1531, 2
    %v1533 = vmax.f32 %v1531, %v1532
    %v1534 = vrot.slane %v1533, 1
    %v1535 = vmax.f32 %v1533, %v1534
    %v1536 = vadd.f32 %v1499, %v1500
    %v1537 = vadd.f32 %v1536, %v1501
    %v1538 = vadd.f32 %v1537, %v1502
    %v1539 = vadd.f32 %v1538, %v1503
    %v1540 = vadd.f32 %v1539, %v1504
    %v1541 = vadd.f32 %v1540, %v1505
    %v1542 = vadd.f32 %v1541, %v1506
    %v1543 = vadd.f32 %v1542, %v1507
    %v1544 = vadd.f32 %v1543, %v1508
    %v1545 = vadd.f32 %v1544, %v1509
    %v1546 = vadd.f32 %v1545, %v1510
    %v1547 = vadd.f32 %v1546, %v1511
    %v1548 = vadd.f32 %v1547, %v1512
    %v1549 = vadd.f32 %v1548, %v1513
    %v1550 = vadd.f32 %v1549, %v1514
    %v1551 = vrot.slane %v1550, 4
    %v1552 = vadd.f32 %v1550, %v1551
    %v1553 = vrot.slane %v1552, 2
    %v1554 = vadd.f32 %v1552, %v1553
    %v1555 = vrot.slane %v1554, 1
    %v1556 = vadd.f32 %v1554, %v1555
    %v1557 = vmul.f32 %v1556, 0.0625
    %v1558 = vld [vmem:[#allocation11] sm:$0xff]
    %v1559 = vld [vmem:[#allocation11 + $0x8] sm:$0xff]
    %v1560 = vld [vmem:[#allocation11 + $0x10] sm:$0xff]
    %v1561 = vld [vmem:[#allocation11 + $0x18] sm:$0xff]
    %v1562 = vld [vmem:[#allocation11 + $0x20] sm:$0xff]
    %v1563 = vld [vmem:[#allocation11 + $0x28] sm:$0xff]
    %v1564 = vld [vmem:[#allocation11 + $0x30] sm:$0xff]
    %v1565 = vld [vmem:[#allocation11 + $0x38] sm:$0xff]
    %v1566 = vld [vmem:[#allocation11 + $0x40] sm:$0xff]
    %v1567 = vld [vmem:[#allocation11 + $0x48] sm:$0xff]
    %v1568 = vld [vmem:[#allocation11 + $0x50] sm:$0xff]
    %v1569 = vld [vmem:[#allocation11 + $0x58] sm:$0xff]
    %v1570 = vld [vmem:[#allocation11 + $0x60] sm:$0xff]
    %v1571 = vld [vmem:[#allocation11 + $0x68] sm:$0xff]
    %v1572 = vld [vmem:[#allocation11 + $0x70] sm:$0xff]
    %v1573 = vld [vmem:[#allocation11 + $0x78] sm:$0xff]
    %v1574 = vld [vmem:[#allocation13] sm:$0xff]
    %v1575 = vld [vmem:[#allocation13 + $0x8] sm:$0xff]
    %v1576 = vld [vmem:[#allocation13 + $0x10] sm:$0xff]
    %v1577 = vld [vmem:[#allocation13 + $0x18] sm:$0xff]
    %v1578 = vld [vmem:[#allocation13 + $0x20] sm:$0xff]
    %v1579 = vld [vmem:[#allocation13 + $0x28] sm:$0xff]
    %v1580 = vld [vmem:[#allocation13 + $0x30] sm:$0xff]
    %v1581 = vld [vmem:[#allocation13 + $0x38] sm:$0xff]
    %v1582 = vld [vmem:[#allocation13 + $0x40] sm:$0xff]
    %v1583 = vld [vmem:[#allocation13 + $0x48] sm:$0xff]
    %v1584 = vld [vmem:[#allocation13 + $0x50] sm:$0xff]
    %v1585 = vld [vmem:[#allocation13 + $0x58] sm:$0xff]
    %v1586 = vld [vmem:[#allocation13 + $0x60] sm:$0xff]
    %v1587 = vld [vmem:[#allocation13 + $0x68] sm:$0xff]
    %v1588 = vld [vmem:[#allocation13 + $0x70] sm:$0xff]
    %v1589 = vld [vmem:[#allocation13 + $0x78] sm:$0xff]
    %1590 = vmatprep.subr.mxu0 0.0
    %1591 = vmatpush1.msra.mxu0 %v1589
    %1592 = vmatprep.subr.mxu0 0.0
    %1593 = vmatpush1.msra.mxu0 %v1588
    %1594 = vmatprep.subr.mxu0 0.0
    %1595 = vmatpush1.msra.mxu0 %v1587
    %1596 = vmatprep.subr.mxu0 0.0
    %1597 = vmatpush1.msra.mxu0 %v1586
    %1598 = vmatprep.subr.mxu0 0.0
    %1599 = vmatpush1.msra.mxu0 %v1585
    %1600 = vmatprep.subr.mxu0 0.0
    %1601 = vmatpush1.msra.mxu0 %v1584
    %1602 = vmatprep.subr.mxu0 0.0
    %1603 = vmatpush1.msra.mxu0 %v1583
    %1604 = vmatprep.subr.mxu0 0.0
    %1605 = vmatpush1.msra.mxu0 %v1582
    %1606 = vmatprep.subr.mxu0 0.0
    %1607 = vmatpush1.msra.mxu0 %v1581
    %1608 = vmatprep.subr.mxu0 0.0
    %1609 = vmatpush1.msra.mxu0 %v1580
    %1610 = vmatprep.subr.mxu0 0.0
    %1611 = vmatpush1.msra.mxu0 %v1579
    %1612 = vmatprep.subr.mxu0 0.0
    %1613 = vmatpush1.msra.mxu0 %v1578
    %1614 = vmatprep.subr.mxu0 0.0
    %1615 = vmatpush1.msra.mxu0 %v1577
    %1616 = vmatprep.subr.mxu0 0.0
    %1617 = vmatpush1.msra.mxu0 %v1576
    %1618 = vmatprep.subr.mxu0 0.0
    %1619 = vmatpush1.msra.mxu0 %v1575
    %1620 = vmatprep.subr.mxu0 0.0
    %1621 = vmatpush1.msra.mxu0 %v1574
    %1622 = vmatprep.subr.mxu0 0.0
    %1623 = vmatpush2.msra.mxu0 0.0
    %1624 = vmatprep.subr.mxu0 0.0
    %1625 = vmatpush2.msra.mxu0 0.0
    %1626 = vmatprep.subr.mxu0 0.0
    %1627 = vmatpush2.msra.mxu0 0.0
    %1628 = vmatprep.subr.mxu0 0.0
    %1629 = vmatpush2.msra.mxu0 0.0
    %1630 = vmatprep.subr.mxu0 0.0
    %1631 = vmatpush2.msra.mxu0 0.0
    %1632 = vmatprep.subr.mxu0 0.0
    %1633 = vmatpush2.msra.mxu0 0.0
    %1634 = vmatprep.subr.mxu0 0.0
    %1635 = vmatpush2.msra.mxu0 0.0
    %1636 = vmatprep.subr.mxu0 0.0
    %1637 = vmatpush2.msra.mxu0 0.0
    %1638 = vmatprep.subr.mxu0 0.0
    %1639 = vmatpush2.msra.mxu0 0.0
    %1640 = vmatprep.subr.mxu0 0.0
    %1641 = vmatpush2.msra.mxu0 0.0
    %1642 = vmatprep.subr.mxu0 0.0
    %1643 = vmatpush2.msra.mxu0 0.0
    %1644 = vmatprep.subr.mxu0 0.0
    %1645 = vmatpush2.msra.mxu0 0.0
    %1646 = vmatprep.subr.mxu0 0.0
    %1647 = vmatpush2.msra.mxu0 0.0
    %1648 = vmatprep.subr.mxu0 0.0
    %1649 = vmatpush2.msra.mxu0 0.0
    %1650 = vmatprep.subr.mxu0 0.0
    %1651 = vmatpush2.msra.mxu0 0.0
    %1652 = vmatprep.subr.mxu0 0.0
    %1653 = vmatpush2.msra.mxu0 0.0
    %1654 = vmatprep.mubr.f32.mxu0 0.0
    %1655 = vmatmul.mubr.f32.gmra.mxu0 %v1557
    %v1656 = vpop.f32.mrf.mxu0
    %v1657 = vadd.f32 0.0, %v1656
    %v1658 = vpop.f32.mrf.mxu0
    %1659 = vdwg.mxu0
    %1660 = vmatprep.subr.mxu0 0.0
    %1661 = vmatpush1.msra.mxu0 %v1573
    %1662 = vmatprep.subr.mxu0 0.0
    %1663 = vmatpush1.msra.mxu0 %v1572
    %1664 = vmatprep.subr.mxu0 0.0
    %1665 = vmatpush1.msra.mxu0 %v1571
    %1666 = vmatprep.subr.mxu0 0.0
    %1667 = vmatpush1.msra.mxu0 %v1570
    %1668 = vmatprep.subr.mxu0 0.0
    %1669 = vmatpush1.msra.mxu0 %v1569
    %1670 = vmatprep.subr.mxu0 0.0
    %1671 = vmatpush1.msra.mxu0 %v1568
    %1672 = vmatprep.subr.mxu0 0.0
    %1673 = vmatpush1.msra.mxu0 %v1567
    %1674 = vmatprep.subr.mxu0 0.0
    %1675 = vmatpush1.msra.mxu0 %v1566
    %1676 = vmatprep.subr.mxu0 0.0
    %1677 = vmatpush1.msra.mxu0 %v1565
    %1678 = vmatprep.subr.mxu0 0.0
    %1679 = vmatpush1.msra.mxu0 %v1564
    %1680 = vmatprep.subr.mxu0 0.0
    %1681 = vmatpush1.msra.mxu0 %v1563
    %1682 = vmatprep.subr.mxu0 0.0
    %1683 = vmatpush1.msra.mxu0 %v1562
    %1684 = vmatprep.subr.mxu0 0.0
    %1685 = vmatpush1.msra.mxu0 %v1561
    %1686 = vmatprep.subr.mxu0 0.0
    %1687 = vmatpush1.msra.mxu0 %v1560
    %1688 = vmatprep.subr.mxu0 0.0
    %1689 = vmatpush1.msra.mxu0 %v1559
    %1690 = vmatprep.subr.mxu0 0.0
    %1691 = vmatpush1.msra.mxu0 %v1558
    %1692 = vmatprep.subr.mxu0 0.0
    %1693 = vmatpush2.msra.mxu0 0.0
    %1694 = vmatprep.subr.mxu0 0.0
    %1695 = vmatpush2.msra.mxu0 0.0
    %1696 = vmatprep.subr.mxu0 0.0
    %1697 = vmatpush2.msra.mxu0 0.0
    %1698 = vmatprep.subr.mxu0 0.0
    %1699 = vmatpush2.msra.mxu0 0.0
    %1700 = vmatprep.subr.mxu0 0.0
    %1701 = vmatpush2.msra.mxu0 0.0
    %1702 = vmatprep.subr.mxu0 0.0
    %1703 = vmatpush2.msra.mxu0 0.0
    %1704 = vmatprep.subr.mxu0 0.0
    %1705 = vmatpush2.msra.mxu0 0.0
    %1706 = vmatprep.subr.mxu0 0.0
    %1707 = vmatpush2.msra.mxu0 0.0
    %1708 = vmatprep.subr.mxu0 0.0
    %1709 = vmatpush2.msra.mxu0 0.0
    %1710 = vmatprep.subr.mxu0 0.0
    %1711 = vmatpush2.msra.mxu0 0.0
    %1712 = vmatprep.subr.mxu0 0.0
    %1713 = vmatpush2.msra.mxu0 0.0
    %1714 = vmatprep.subr.mxu0 0.0
    %1715 = vmatpush2.msra.mxu0 0.0
    %1716 = vmatprep.subr.mxu0 0.0
    %1717 = vmatpush2.msra.mxu0 0.0
    %1718 = vmatprep.subr.mxu0 0.0
    %1719 = vmatpush2.msra.mxu0 0.0
    %1720 = vmatprep.subr.mxu0 0.0
    %1721 = vmatpush2.msra.mxu0 0.0
    %1722 = vmatprep.subr.mxu0 0.0
    %1723 = vmatpush2.msra.mxu0 0.0
    %1724 = vmatprep.mubr.f32.mxu0 0.0
    %1725 = vmatmul.mubr.f32.gmra.mxu0 %v1535
    %v1726 = vpop.f32.mrf.mxu0
    %v1727 = vadd.f32 %v1657, %v1726
    %v1728 = vpop.f32.mrf.mxu0
    %1729 = vdwg.mxu0
    %v1730 = vld [vmem:[%s10] sm:$0x1]
    %v1731 = vadd.f32 %v1727, %v1730
    %1732 = vst [vmem:[#allocation14] sm:$0x1] %v1731
    // Predicated region
    $region74: #{tpu_custom_call.1} parent=1 // pred_check
      _
    $region75: #{tpu_custom_call.1} parent=1 // pred_check_branch
      %1734 = sbr.rel (0) target = $region77
    $region76: #{tpu_custom_call.1} parent=1 // pred_region
      %s1736 = ssub.s32 16, 16
      %1737 = vsyncadd [#allocation4], %s1736
      %s1739 = sshll.u32 [#allocation14], 4
      %s1740 = int_to_ptr.vmem [resolvable:$true] %s1739
      %1742 = dma.vmem_to_hbm [thread:$0]  %s1740, 16, %s11, [#allocation4]
    $region77: #{tpu_custom_call.1} parent=1 // pred_fallthru
      _
    // Predicated region
    $region78: #{tpu_custom_call.1} parent=1 // pred_check
      _
    $region79: #{tpu_custom_call.1} parent=1 // pred_check_branch
      %1744 = sbr.rel (0) target = $region81
    $region80: #{tpu_custom_call.1} parent=1 // pred_region
      %1745 = dma.done [#allocation4], 16
    $region81: #{tpu_custom_call.1} parent=1 // pred_fallthru
      _
    %1746 = vsyncpa [#allocation3], 1
    %1747 = vsyncpa [#allocation6], 1
    %1748 = vsyncpa [#allocation9], 1
    %1749 = vsyncpa [#allocation12], 1
    %1750 = vsyncpa [#allocation4], 1

</llo_original>
